<compile_context>
chip_gen: v5e
topology: v5e:2x2
jax: 0.10.0
libtpu: 0.0.40
codegen_flags: <defaults>
</compile_context>

<pallas_src>
import jax
import jax.numpy as jnp
from jax.experimental import pallas as pl
from jax.experimental.pallas import tpu as pltpu

LANE = 128


def _ceil_to(v, m):
    return ((v + m - 1) // m) * m


def _pad2d(a, rows, cols):
    r, c = a.shape
    return jnp.pad(a, ((0, rows - r), (0, cols - c)))


def _vmem_limit_bytes():
    # Generation-aware VMEM limit (leave headroom below physical capacity).
    try:
        cap = int(pltpu.get_tpu_info().vmem_capacity_bytes)
    except Exception:
        cap = 64 * 1024 * 1024
    return max(32 * 1024 * 1024, min(cap - 16 * 1024 * 1024, 112 * 1024 * 1024))


# --------------------------- SAGEConv layer kernel ---------------------------

def _sage_conv_kernel(a_ref, xk_ref, xi_ref, invdeg_ref, wl_ref, wr_ref, b_ref,
                      o_ref, acc_ref):
    """One row tile of:  h = relu( ((A @ x) * inv_deg) @ W_l + x @ W_r + b ).

    Grid = (row tiles i [parallel], reduction tiles k over N [arbitrary]).
    A tile is int8 edge counts; the int8->bf16 convert is VPU filler under the MXU.
    """
    k = pl.program_id(1)

    @pl.when(k == 0)
    def _():
        acc_ref[...] = jnp.zeros_like(acc_ref)

    acc_ref[...] += jnp.dot(a_ref[...].astype(jnp.bfloat16), xk_ref[...],
                            preferred_element_type=jnp.float32)

    @pl.when(k == pl.num_programs(1) - 1)
    def _():
        mean = acc_ref[...] * invdeg_ref[...]          # exact f32 1/deg scaling
        h = (jnp.dot(mean.astype(jnp.bfloat16), wl_ref[...],
                     preferred_element_type=jnp.float32)
             + jnp.dot(xi_ref[...], wr_ref[...],
                       preferred_element_type=jnp.float32)
             + b_ref[...])
        o_ref[...] = jnp.maximum(h, 0.0).astype(o_ref.dtype)


def _sage_conv(x_feat, a_i8, inv_deg, w_l, w_r, bias, *, tm, tk, out_dtype,
               vmem_limit):
    n_p, c_p = x_feat.shape
    f_p = w_l.shape[1]
    grid = (n_p // tm, n_p // tk)
    return pl.pallas_call(
        _sage_conv_kernel,
        out_shape=jax.ShapeDtypeStruct((n_p, f_p), out_dtype),
        grid_spec=pltpu.PrefetchScalarGridSpec(
            num_scalar_prefetch=0,
            grid=grid,
            in_specs=[
                pl.BlockSpec((tm, tk), lambda i, k: (i, k)),       # A counts (int8)
                pl.BlockSpec((tk, c_p), lambda i, k: (k, 0)),      # x rows (reduction)
                pl.BlockSpec((tm, c_p), lambda i, k: (i, 0)),      # x rows (W_r term)
                pl.BlockSpec((tm, 1), lambda i, k: (i, 0)),        # 1/deg (f32)
                pl.BlockSpec((c_p, f_p), lambda i, k: (0, 0)),     # W_l (bf16)
                pl.BlockSpec((c_p, f_p), lambda i, k: (0, 0)),     # W_r (bf16)
                pl.BlockSpec((1, f_p), lambda i, k: (0, 0)),       # bias (f32)
            ],
            out_specs=pl.BlockSpec((tm, f_p), lambda i, k: (i, 0)),
            scratch_shapes=[pltpu.VMEM((tm, c_p), jnp.float32)],
        ),
        compiler_params=pltpu.CompilerParams(
            dimension_semantics=("parallel", "arbitrary"),
            vmem_limit_bytes=vmem_limit),
    )(a_i8, x_feat, x_feat, inv_deg, w_l, w_r, bias)


# ------------------------- pool + final Linear kernel ------------------------

def _pool_linear_kernel(p_ref, invc_ref, h_ref, w_ref, b_ref, o_ref):
    # exact global_mean_pool: 0/1 membership matmul then f32 1/count scale
    pooled = (jnp.dot(p_ref[...], h_ref[...], preferred_element_type=jnp.float32)
              * invc_ref[...])
    # TODO(synk): dropout(p=0.07) in training mode; eval mode is identity.
    o_ref[...] = jnp.dot(pooled, w_ref[...],
                         preferred_element_type=jnp.float32) + b_ref[...]


def _pool_linear(p01, inv_cnt, h, w, b, *, vmem_limit):
    g_p = p01.shape[0]
    o_p = w.shape[1]
    vmem = pl.BlockSpec(memory_space=pltpu.MemorySpace.VMEM)
    return pl.pallas_call(
        _pool_linear_kernel,
        out_shape=jax.ShapeDtypeStruct((g_p, o_p), jnp.float32),
        in_specs=[vmem] * 5,
        out_specs=vmem,
        compiler_params=pltpu.CompilerParams(vmem_limit_bytes=vmem_limit),
    )(p01, inv_cnt, h, w, b)


# --------------------------------- forward -----------------------------------

@jax.jit
def gcn_forward(x, adj_counts, p01, params):
    (w1l, w1r, b1, w2l, w2r, b2, wl, bl) = params
    n, c_in = x.shape
    hidden = w1l.shape[1]
    out_dim = wl.shape[1]
    g = p01.shape[0]

    c_p = _ceil_to(c_in, LANE)
    f_p = _ceil_to(hidden, LANE)
    o_p = _ceil_to(out_dim, LANE)
    g_p = _ceil_to(g, 8)
    # node-dim padding: one full 128-row tile for small graphs, else multiples of
    # the 256-row tile so the (parallel, arbitrary) grid divides evenly.
    n_p = LANE if n <= LANE else _ceil_to(n, 256)
    tm = min(256, n_p)
    tk = min(256, n_p)
    vmem_limit = _vmem_limit_bytes()

    # ---- operands ------------------------------------------------------------
    x_bf = _pad2d(x, n_p, c_p).astype(jnp.bfloat16)
    # Unnormalized edge counts in int8 (exact for in-degree <= 127); the mean
    # normalization is an f32 post-scale inside the kernel.
    a_i8 = _pad2d(adj_counts, n_p, n_p).astype(jnp.int8)
    deg = jnp.pad(adj_counts.sum(axis=1), (0, n_p - n))
    inv_deg = jnp.where(deg > 0, 1.0 / jnp.maximum(deg, 1.0), 0.0).reshape(n_p, 1)

    p_pad = _pad2d(p01, g_p, n_p)                              # 0/1 membership, f32
    cnt = jnp.pad(p01.sum(axis=1), (0, g_p - g))
    inv_cnt = jnp.where(cnt > 0, 1.0 / jnp.maximum(cnt, 1.0), 0.0).reshape(g_p, 1)

    w1l_p = _pad2d(w1l, c_p, f_p).astype(jnp.bfloat16)
    w1r_p = _pad2d(w1r, c_p, f_p).astype(jnp.bfloat16)
    b1_p = _pad2d(b1, 1, f_p)
    w2l_p = _pad2d(w2l, f_p, f_p).astype(jnp.bfloat16)
    w2r_p = _pad2d(w2r, f_p, f_p).astype(jnp.bfloat16)
    b2_p = _pad2d(b2, 1, f_p)
    wl_p = _pad2d(wl, f_p, o_p)                                # final Linear: f32
    bl_p = _pad2d(bl, 1, o_p)

    # NOTE: padded node rows n..n_p-1 of h1/h2 carry relu(bias) garbage; this is
    # harmless only because the padded COLUMNS of A and P are zero (invariant!).
    h1 = _sage_conv(x_bf, a_i8, inv_deg, w1l_p, w1r_p, b1_p,
                    tm=tm, tk=tk, out_dtype=jnp.bfloat16, vmem_limit=vmem_limit)
    h2 = _sage_conv(h1, a_i8, inv_deg, w2l_p, w2r_p, b2_p,
                    tm=tm, tk=tk, out_dtype=jnp.float32, vmem_limit=vmem_limit)
    out = _pool_linear(p_pad, inv_cnt, h2, wl_p, bl_p, vmem_limit=vmem_limit)
    return out[:g, :out_dim]


# ------------------------------ glue (plain JAX) ------------------------------

def build_graph_operators(edge_index, batch, num_nodes, num_graphs):
    """adj_counts[dst, src] = multiplicity of edge src->dst (PyG scatter-mean
    divides by in-degree counting multiplicity); p01[g, i] = 1 iff batch[i]==g."""
    src, dst = edge_index[0], edge_index[1]
    adj_counts = jnp.zeros((num_nodes, num_nodes), jnp.float32).at[dst, src].add(1.0)
    p01 = (batch[None, :] == jnp.arange(num_graphs)[:, None]).astype(jnp.float32)
    return adj_counts, p01


def init_params(key, in_chann, hidden, out_dim=4):
    ks = jax.random.split(key, 8)

    def lin(k, fan_in, fan_out):
        bound = 1.0 / jnp.sqrt(fan_in)
        return jax.random.uniform(k, (fan_in, fan_out), jnp.float32, -bound, bound)

    w1l = lin(ks[0], in_chann, hidden)
    w1r = lin(ks[1], in_chann, hidden)
    b1 = jax.random.uniform(ks[2], (1, hidden), jnp.float32, -0.1, 0.1)
    w2l = lin(ks[3], hidden, hidden)
    w2r = lin(ks[4], hidden, hidden)
    b2 = jax.random.uniform(ks[5], (1, hidden), jnp.float32, -0.1, 0.1)
    wl = lin(ks[6], hidden, out_dim)
    bl = jax.random.uniform(ks[7], (1, out_dim), jnp.float32, -0.1, 0.1)
    return (w1l, w1r, b1, w2l, w2r, b2, wl, bl)


if __name__ == "__main__":
    N = 64          # nodes (batched graphs share one block-diagonal adjacency)
    IN_CHANN = 4    # input node-feature dim
    HIDDEN = 32     # hidden_channels
    G = 4           # graphs in the batch
    E = 256         # edges

    key = jax.random.PRNGKey(0)
    k_x, k_e, k_p = jax.random.split(key, 3)

    x = jax.random.normal(k_x, (N, IN_CHANN), jnp.float32)
    edge_index = jax.random.randint(k_e, (2, E), 0, N, jnp.int32)
    batch = jnp.repeat(jnp.arange(G, dtype=jnp.int32), N // G)

    adj_counts, p01 = build_graph_operators(edge_index, batch, N, G)
    params = init_params(k_p, IN_CHANN, HIDDEN, out_dim=4)

    out = gcn_forward(x, adj_counts, p01, params)
    jax.block_until_ready(out)
    assert out.shape == (G, 4) and out.dtype == jnp.float32
    assert bool(jnp.all(jnp.isfinite(out)))
    print("KERNEL_OK")
</pallas_src>

<mosaic_0001>
module attributes {stable_mosaic.version = 11 : i64} {
  func.func @_pool_linear_kernel(%arg0: memref<8x128xf32, #tpu.memory_space<vmem>>, %arg1: memref<8x1xf32, #tpu.memory_space<vmem>>, %arg2: memref<128x128xf32, #tpu.memory_space<vmem>>, %arg3: memref<128x128xf32, #tpu.memory_space<vmem>>, %arg4: memref<1x128xf32, #tpu.memory_space<vmem>>, %arg5: memref<8x128xf32, #tpu.memory_space<vmem>>) attributes {dimension_semantics = [], scalar_prefetch = 0 : i64, scratch_operands = 0 : i64, tpu.core_type = #tpu.core_type<tc>} {
    %c0 = arith.constant 0 : index
    %c0_0 = arith.constant 0 : index
    %0 = vector.load %arg0[%c0, %c0_0] : memref<8x128xf32, #tpu.memory_space<vmem>>, vector<8x128xf32>
    %c0_1 = arith.constant 0 : index
    %c0_2 = arith.constant 0 : index
    %1 = vector.load %arg2[%c0_1, %c0_2] : memref<128x128xf32, #tpu.memory_space<vmem>>, vector<128x128xf32>
    %cst = arith.constant dense<0.000000e+00> : vector<8x128xf32>
    %2 = tpu.matmul %0, %1, %cst {dimension_numbers = #tpu.dot_dimension_numbers<[1], [0], [0], [1], [0, 0, 1, 1], [], []>} : vector<8x128xf32>, vector<128x128xf32>, vector<8x128xf32> -> vector<8x128xf32>
    %c0_3 = arith.constant 0 : index
    %c0_4 = arith.constant 0 : index
    %3 = vector.load %arg1[%c0_3, %c0_4] : memref<8x1xf32, #tpu.memory_space<vmem>>, vector<8x1xf32>
    %4 = vector.broadcast %3 : vector<8x1xf32> to vector<8x128xf32>
    %5 = arith.mulf %2, %4 : vector<8x128xf32>
    %c0_5 = arith.constant 0 : index
    %c0_6 = arith.constant 0 : index
    %6 = vector.load %arg3[%c0_5, %c0_6] : memref<128x128xf32, #tpu.memory_space<vmem>>, vector<128x128xf32>
    %cst_7 = arith.constant dense<0.000000e+00> : vector<8x128xf32>
    %7 = tpu.matmul %5, %6, %cst_7 {dimension_numbers = #tpu.dot_dimension_numbers<[1], [0], [0], [1], [0, 0, 1, 1], [], []>} : vector<8x128xf32>, vector<128x128xf32>, vector<8x128xf32> -> vector<8x128xf32>
    %c0_8 = arith.constant 0 : index
    %c0_9 = arith.constant 0 : index
    %8 = vector.load %arg4[%c0_8, %c0_9] : memref<1x128xf32, #tpu.memory_space<vmem>>, vector<1x128xf32>
    %9 = vector.broadcast %8 : vector<1x128xf32> to vector<8x128xf32>
    %10 = arith.addf %7, %9 : vector<8x128xf32>
    %c0_10 = arith.constant 0 : index
    %c0_11 = arith.constant 0 : index
    %11 = vector.load %arg5[%c0_10, %c0_11] : memref<8x128xf32, #tpu.memory_space<vmem>>, vector<8x128xf32>
    tpu.vector_store %arg5[%c0_10, %c0_11], %10 {strides = array<i32>} : memref<8x128xf32, #tpu.memory_space<vmem>>, vector<8x128xf32>,
    return
  }
}

module attributes {stable_mosaic.version = 11 : i64} {
  func.func @_sage_conv_kernel(%arg0: i32, %arg1: i32, %arg2: memref<128x128xi8, #tpu.memory_space<vmem>>, %arg3: memref<128x128xbf16, #tpu.memory_space<vmem>>, %arg4: memref<128x128xbf16, #tpu.memory_space<vmem>>, %arg5: memref<128x1xf32, #tpu.memory_space<vmem>>, %arg6: memref<128x128xbf16, #tpu.memory_space<vmem>>, %arg7: memref<128x128xbf16, #tpu.memory_space<vmem>>, %arg8: memref<1x128xf32, #tpu.memory_space<vmem>>, %arg9: memref<128x128xf32, #tpu.memory_space<vmem>>, %arg10: memref<128x128xf32, #tpu.memory_space<vmem>>) attributes {dimension_semantics = [#tpu.dimension_semantics<parallel>, #tpu.dimension_semantics<arbitrary>], iteration_bounds = array<i64: 1, 1>, scalar_prefetch = 0 : i64, scratch_operands = 1 : i64, tpu.core_type = #tpu.core_type<tc>, window_params = [{transform_indices = @transform_0, window_bounds = array<i64: 128, 128>}, {transform_indices = @transform_1, window_bounds = array<i64: 128, 128>}, {transform_indices = @transform_2, window_bounds = array<i64: 128, 128>}, {transform_indices = @transform_3, window_bounds = array<i64: 128, 1>}, {pipeline_mode = #tpu.pipeline_mode<synchronous>, transform_indices = @transform_4, window_bounds = array<i64: 128, 128>}, {pipeline_mode = #tpu.pipeline_mode<synchronous>, transform_indices = @transform_5, window_bounds = array<i64: 128, 128>}, {pipeline_mode = #tpu.pipeline_mode<synchronous>, transform_indices = @transform_6, window_bounds = array<i64: 1, 128>}, {transform_indices = @transform_7, window_bounds = array<i64: 128, 128>}]} {
    %c0_i32 = arith.constant 0 : i32
    %0 = arith.cmpi eq, %arg1, %c0_i32 : i32
    %1 = arith.extui %0 : i1 to i32
    %c0_i32_0 = arith.constant 0 : i32
    %2 = arith.cmpi ne, %1, %c0_i32_0 : i32
    scf.if %2 {
      %cst_10 = arith.constant 0.000000e+00 : f32
      %13 = vector.broadcast %cst_10 : f32 to vector<128x128xf32>
      %c0_11 = arith.constant 0 : index
      %c0_12 = arith.constant 0 : index
      %14 = vector.load %arg10[%c0_11, %c0_12] : memref<128x128xf32, #tpu.memory_space<vmem>>, vector<128x128xf32>
      tpu.vector_store %arg10[%c0_11, %c0_12], %13 {strides = array<i32>} : memref<128x128xf32, #tpu.memory_space<vmem>>, vector<128x128xf32>,
    } else {
    }
    %c0 = arith.constant 0 : index
    %c0_1 = arith.constant 0 : index
    %3 = vector.load %arg10[%c0, %c0_1] : memref<128x128xf32, #tpu.memory_space<vmem>>, vector<128x128xf32>
    %c0_2 = arith.constant 0 : index
    %c0_3 = arith.constant 0 : index
    %4 = vector.load %arg2[%c0_2, %c0_3] : memref<128x128xi8, #tpu.memory_space<vmem>>, vector<128x128xi8>
    %5 = arith.sitofp %4 : vector<128x128xi8> to vector<128x128xbf16>
    %c0_4 = arith.constant 0 : index
    %c0_5 = arith.constant 0 : index
    %6 = vector.load %arg3[%c0_4, %c0_5] : memref<128x128xbf16, #tpu.memory_space<vmem>>, vector<128x128xbf16>
    %cst = arith.constant dense<0.000000e+00> : vector<128x128xf32>
    %7 = tpu.matmul %5, %6, %cst {dimension_numbers = #tpu.dot_dimension_numbers<[1], [0], [0], [1], [0, 0, 1, 1], [], []>} : vector<128x128xbf16>, vector<128x128xbf16>, vector<128x128xf32> -> vector<128x128xf32>
    %8 = arith.addf %3, %7 : vector<128x128xf32>
    %c0_6 = arith.constant 0 : index
    %c0_7 = arith.constant 0 : index
    %9 = vector.load %arg10[%c0_6, %c0_7] : memref<128x128xf32, #tpu.memory_space<vmem>>, vector<128x128xf32>
    tpu.vector_store %arg10[%c0_6, %c0_7], %8 {strides = array<i32>} : memref<128x128xf32, #tpu.memory_space<vmem>>, vector<128x128xf32>,
    %c0_i32_8 = arith.constant 0 : i32
    %10 = arith.cmpi eq, %arg1, %c0_i32_8 : i32
    %11 = arith.extui %10 : i1 to i32
    %c0_i32_9 = arith.constant 0 : i32
    %12 = arith.cmpi ne, %11, %c0_i32_9 : i32
    scf.if %12 {
      %c0_10 = arith.constant 0 : index
      %c0_11 = arith.constant 0 : index
      %13 = vector.load %arg10[%c0_10, %c0_11] : memref<128x128xf32, #tpu.memory_space<vmem>>, vector<128x128xf32>
      %c0_12 = arith.constant 0 : index
      %c0_13 = arith.constant 0 : index
      %14 = vector.load %arg5[%c0_12, %c0_13] : memref<128x1xf32, #tpu.memory_space<vmem>>, vector<128x1xf32>
      %15 = vector.broadcast %14 : vector<128x1xf32> to vector<128x128xf32>
      %16 = arith.mulf %13, %15 : vector<128x128xf32>
      %17 = arith.truncf %16 : vector<128x128xf32> to vector<128x128xbf16>
      %c0_14 = arith.constant 0 : index
      %c0_15 = arith.constant 0 : index
      %18 = vector.load %arg6[%c0_14, %c0_15] : memref<128x128xbf16, #tpu.memory_space<vmem>>, vector<128x128xbf16>
      %cst_16 = arith.constant dense<0.000000e+00> : vector<128x128xf32>
      %19 = tpu.matmul %17, %18, %cst_16 {dimension_numbers = #tpu.dot_dimension_numbers<[1], [0], [0], [1], [0, 0, 1, 1], [], []>} : vector<128x128xbf16>, vector<128x128xbf16>, vector<128x128xf32> -> vector<128x128xf32>
      %c0_17 = arith.constant 0 : index
      %c0_18 = arith.constant 0 : index
      %20 = vector.load %arg4[%c0_17, %c0_18] : memref<128x128xbf16, #tpu.memory_space<vmem>>, vector<128x128xbf16>
      %c0_19 = arith.constant 0 : index
      %c0_20 = arith.constant 0 : index
      %21 = vector.load %arg7[%c0_19, %c0_20] : memref<128x128xbf16, #tpu.memory_space<vmem>>, vector<128x128xbf16>
      %cst_21 = arith.constant dense<0.000000e+00> : vector<128x128xf32>
      %22 = tpu.matmul %20, %21, %cst_21 {dimension_numbers = #tpu.dot_dimension_numbers<[1], [0], [0], [1], [0, 0, 1, 1], [], []>} : vector<128x128xbf16>, vector<128x128xbf16>, vector<128x128xf32> -> vector<128x128xf32>
      %23 = arith.addf %19, %22 : vector<128x128xf32>
      %c0_22 = arith.constant 0 : index
      %c0_23 = arith.constant 0 : index
      %24 = vector.load %arg8[%c0_22, %c0_23] : memref<1x128xf32, #tpu.memory_space<vmem>>, vector<1x128xf32>
      %25 = vector.broadcast %24 : vector<1x128xf32> to vector<128x128xf32>
      %26 = arith.addf %23, %25 : vector<128x128xf32>
      %cst_24 = arith.constant 0.000000e+00 : f32
      %27 = vector.broadcast %cst_24 : f32 to vector<128x128xf32>
      %28 = arith.maximumf %26, %27 : vector<128x128xf32>
      %c0_25 = arith.constant 0 : index
      %c0_26 = arith.constant 0 : index
      %29 = vector.load %arg9[%c0_25, %c0_26] : memref<128x128xf32, #tpu.memory_space<vmem>>, vector<128x128xf32>
      tpu.vector_store %arg9[%c0_25, %c0_26], %28 {strides = array<i32>} : memref<128x128xf32, #tpu.memory_space<vmem>>, vector<128x128xf32>,
    } else {
    }
    return
  }
  func.func @transform_0(%arg0: i32, %arg1: i32) -> (i32, i32) {
    %c0_i32 = arith.constant 0 : i32
    return %arg0, %arg1 : i32, i32
  }
  func.func @transform_1(%arg0: i32, %arg1: i32) -> (i32, i32) {
    %c0_i32 = arith.constant 0 : i32
    %c0_i32_0 = arith.constant 0 : i32
    return %arg1, %c0_i32 : i32, i32
  }
  func.func @transform_2(%arg0: i32, %arg1: i32) -> (i32, i32) {
    %c0_i32 = arith.constant 0 : i32
    %c0_i32_0 = arith.constant 0 : i32
    return %arg0, %c0_i32 : i32, i32
  }
  func.func @transform_3(%arg0: i32, %arg1: i32) -> (i32, i32) {
    %c0_i32 = arith.constant 0 : i32
    %c0_i32_0 = arith.constant 0 : i32
    return %arg0, %c0_i32 : i32, i32
  }
  func.func @transform_4(%arg0: i32, %arg1: i32) -> (i32, i32) {
    %c0_i32 = arith.constant 0 : i32
    %c0_i32_0 = arith.constant 0 : i32
    %c0_i32_1 = arith.constant 0 : i32
    return %c0_i32, %c0_i32_0 : i32, i32
  }
  func.func @transform_5(%arg0: i32, %arg1: i32) -> (i32, i32) {
    %c0_i32 = arith.constant 0 : i32
    %c0_i32_0 = arith.constant 0 : i32
    %c0_i32_1 = arith.constant 0 : i32
    return %c0_i32, %c0_i32_0 : i32, i32
  }
  func.func @transform_6(%arg0: i32, %arg1: i32) -> (i32, i32) {
    %c0_i32 = arith.constant 0 : i32
    %c0_i32_0 = arith.constant 0 : i32
    %c0_i32_1 = arith.constant 0 : i32
    return %c0_i32, %c0_i32_0 : i32, i32
  }
  func.func @transform_7(%arg0: i32, %arg1: i32) -> (i32, i32) {
    %c0_i32 = arith.constant 0 : i32
    %c0_i32_0 = arith.constant 0 : i32
    return %arg0, %c0_i32 : i32, i32
  }
}

module attributes {stable_mosaic.version = 11 : i64} {
  func.func @_sage_conv_kernel(%arg0: i32, %arg1: i32, %arg2: memref<128x128xi8, #tpu.memory_space<vmem>>, %arg3: memref<128x128xbf16, #tpu.memory_space<vmem>>, %arg4: memref<128x128xbf16, #tpu.memory_space<vmem>>, %arg5: memref<128x1xf32, #tpu.memory_space<vmem>>, %arg6: memref<128x128xbf16, #tpu.memory_space<vmem>>, %arg7: memref<128x128xbf16, #tpu.memory_space<vmem>>, %arg8: memref<1x128xf32, #tpu.memory_space<vmem>>, %arg9: memref<128x128xbf16, #tpu.memory_space<vmem>>, %arg10: memref<128x128xf32, #tpu.memory_space<vmem>>) attributes {dimension_semantics = [#tpu.dimension_semantics<parallel>, #tpu.dimension_semantics<arbitrary>], iteration_bounds = array<i64: 1, 1>, scalar_prefetch = 0 : i64, scratch_operands = 1 : i64, tpu.core_type = #tpu.core_type<tc>, window_params = [{transform_indices = @transform_0, window_bounds = array<i64: 128, 128>}, {transform_indices = @transform_1, window_bounds = array<i64: 128, 128>}, {transform_indices = @transform_2, window_bounds = array<i64: 128, 128>}, {transform_indices = @transform_3, window_bounds = array<i64: 128, 1>}, {pipeline_mode = #tpu.pipeline_mode<synchronous>, transform_indices = @transform_4, window_bounds = array<i64: 128, 128>}, {pipeline_mode = #tpu.pipeline_mode<synchronous>, transform_indices = @transform_5, window_bounds = array<i64: 128, 128>}, {pipeline_mode = #tpu.pipeline_mode<synchronous>, transform_indices = @transform_6, window_bounds = array<i64: 1, 128>}, {transform_indices = @transform_7, window_bounds = array<i64: 128, 128>}]} {
    %c0_i32 = arith.constant 0 : i32
    %0 = arith.cmpi eq, %arg1, %c0_i32 : i32
    %1 = arith.extui %0 : i1 to i32
    %c0_i32_0 = arith.constant 0 : i32
    %2 = arith.cmpi ne, %1, %c0_i32_0 : i32
    scf.if %2 {
      %cst_10 = arith.constant 0.000000e+00 : f32
      %13 = vector.broadcast %cst_10 : f32 to vector<128x128xf32>
      %c0_11 = arith.constant 0 : index
      %c0_12 = arith.constant 0 : index
      %14 = vector.load %arg10[%c0_11, %c0_12] : memref<128x128xf32, #tpu.memory_space<vmem>>, vector<128x128xf32>
      tpu.vector_store %arg10[%c0_11, %c0_12], %13 {strides = array<i32>} : memref<128x128xf32, #tpu.memory_space<vmem>>, vector<128x128xf32>,
    } else {
    }
    %c0 = arith.constant 0 : index
    %c0_1 = arith.constant 0 : index
    %3 = vector.load %arg10[%c0, %c0_1] : memref<128x128xf32, #tpu.memory_space<vmem>>, vector<128x128xf32>
    %c0_2 = arith.constant 0 : index
    %c0_3 = arith.constant 0 : index
    %4 = vector.load %arg2[%c0_2, %c0_3] : memref<128x128xi8, #tpu.memory_space<vmem>>, vector<128x128xi8>
    %5 = arith.sitofp %4 : vector<128x128xi8> to vector<128x128xbf16>
    %c0_4 = arith.constant 0 : index
    %c0_5 = arith.constant 0 : index
    %6 = vector.load %arg3[%c0_4, %c0_5] : memref<128x128xbf16, #tpu.memory_space<vmem>>, vector<128x128xbf16>
    %cst = arith.constant dense<0.000000e+00> : vector<128x128xf32>
    %7 = tpu.matmul %5, %6, %cst {dimension_numbers = #tpu.dot_dimension_numbers<[1], [0], [0], [1], [0, 0, 1, 1], [], []>} : vector<128x128xbf16>, vector<128x128xbf16>, vector<128x128xf32> -> vector<128x128xf32>
    %8 = arith.addf %3, %7 : vector<128x128xf32>
    %c0_6 = arith.constant 0 : index
    %c0_7 = arith.constant 0 : index
    %9 = vector.load %arg10[%c0_6, %c0_7] : memref<128x128xf32, #tpu.memory_space<vmem>>, vector<128x128xf32>
    tpu.vector_store %arg10[%c0_6, %c0_7], %8 {strides = array<i32>} : memref<128x128xf32, #tpu.memory_space<vmem>>, vector<128x128xf32>,
    %c0_i32_8 = arith.constant 0 : i32
    %10 = arith.cmpi eq, %arg1, %c0_i32_8 : i32
    %11 = arith.extui %10 : i1 to i32
    %c0_i32_9 = arith.constant 0 : i32
    %12 = arith.cmpi ne, %11, %c0_i32_9 : i32
    scf.if %12 {
      %c0_10 = arith.constant 0 : index
      %c0_11 = arith.constant 0 : index
      %13 = vector.load %arg10[%c0_10, %c0_11] : memref<128x128xf32, #tpu.memory_space<vmem>>, vector<128x128xf32>
      %c0_12 = arith.constant 0 : index
      %c0_13 = arith.constant 0 : index
      %14 = vector.load %arg5[%c0_12, %c0_13] : memref<128x1xf32, #tpu.memory_space<vmem>>, vector<128x1xf32>
      %15 = vector.broadcast %14 : vector<128x1xf32> to vector<128x128xf32>
      %16 = arith.mulf %13, %15 : vector<128x128xf32>
      %17 = arith.truncf %16 : vector<128x128xf32> to vector<128x128xbf16>
      %c0_14 = arith.constant 0 : index
      %c0_15 = arith.constant 0 : index
      %18 = vector.load %arg6[%c0_14, %c0_15] : memref<128x128xbf16, #tpu.memory_space<vmem>>, vector<128x128xbf16>
      %cst_16 = arith.constant dense<0.000000e+00> : vector<128x128xf32>
      %19 = tpu.matmul %17, %18, %cst_16 {dimension_numbers = #tpu.dot_dimension_numbers<[1], [0], [0], [1], [0, 0, 1, 1], [], []>} : vector<128x128xbf16>, vector<128x128xbf16>, vector<128x128xf32> -> vector<128x128xf32>
      %c0_17 = arith.constant 0 : index
      %c0_18 = arith.constant 0 : index
      %20 = vector.load %arg4[%c0_17, %c0_18] : memref<128x128xbf16, #tpu.memory_space<vmem>>, vector<128x128xbf16>
      %c0_19 = arith.constant 0 : index
      %c0_20 = arith.constant 0 : index
      %21 = vector.load %arg7[%c0_19, %c0_20] : memref<128x128xbf16, #tpu.memory_space<vmem>>, vector<128x128xbf16>
      %cst_21 = arith.constant dense<0.000000e+00> : vector<128x128xf32>
      %22 = tpu.matmul %20, %21, %cst_21 {dimension_numbers = #tpu.dot_dimension_numbers<[1], [0], [0], [1], [0, 0, 1, 1], [], []>} : vector<128x128xbf16>, vector<128x128xbf16>, vector<128x128xf32> -> vector<128x128xf32>
      %23 = arith.addf %19, %22 : vector<128x128xf32>
      %c0_22 = arith.constant 0 : index
      %c0_23 = arith.constant 0 : index
      %24 = vector.load %arg8[%c0_22, %c0_23] : memref<1x128xf32, #tpu.memory_space<vmem>>, vector<1x128xf32>
      %25 = vector.broadcast %24 : vector<1x128xf32> to vector<128x128xf32>
      %26 = arith.addf %23, %25 : vector<128x128xf32>
      %cst_24 = arith.constant 0.000000e+00 : f32
      %27 = vector.broadcast %cst_24 : f32 to vector<128x128xf32>
      %28 = arith.maximumf %26, %27 : vector<128x128xf32>
      %29 = arith.truncf %28 : vector<128x128xf32> to vector<128x128xbf16>
      %c0_25 = arith.constant 0 : index
      %c0_26 = arith.constant 0 : index
      %30 = vector.load %arg9[%c0_25, %c0_26] : memref<128x128xbf16, #tpu.memory_space<vmem>>, vector<128x128xbf16>
      tpu.vector_store %arg9[%c0_25, %c0_26], %29 {strides = array<i32>} : memref<128x128xbf16, #tpu.memory_space<vmem>>, vector<128x128xbf16>,
    } else {
    }
    return
  }
  func.func @transform_0(%arg0: i32, %arg1: i32) -> (i32, i32) {
    %c0_i32 = arith.constant 0 : i32
    return %arg0, %arg1 : i32, i32
  }
  func.func @transform_1(%arg0: i32, %arg1: i32) -> (i32, i32) {
    %c0_i32 = arith.constant 0 : i32
    %c0_i32_0 = arith.constant 0 : i32
    return %arg1, %c0_i32 : i32, i32
  }
  func.func @transform_2(%arg0: i32, %arg1: i32) -> (i32, i32) {
    %c0_i32 = arith.constant 0 : i32
    %c0_i32_0 = arith.constant 0 : i32
    return %arg0, %c0_i32 : i32, i32
  }
  func.func @transform_3(%arg0: i32, %arg1: i32) -> (i32, i32) {
    %c0_i32 = arith.constant 0 : i32
    %c0_i32_0 = arith.constant 0 : i32
    return %arg0, %c0_i32 : i32, i32
  }
  func.func @transform_4(%arg0: i32, %arg1: i32) -> (i32, i32) {
    %c0_i32 = arith.constant 0 : i32
    %c0_i32_0 = arith.constant 0 : i32
    %c0_i32_1 = arith.constant 0 : i32
    return %c0_i32, %c0_i32_0 : i32, i32
  }
  func.func @transform_5(%arg0: i32, %arg1: i32) -> (i32, i32) {
    %c0_i32 = arith.constant 0 : i32
    %c0_i32_0 = arith.constant 0 : i32
    %c0_i32_1 = arith.constant 0 : i32
    return %c0_i32, %c0_i32_0 : i32, i32
  }
  func.func @transform_6(%arg0: i32, %arg1: i32) -> (i32, i32) {
    %c0_i32 = arith.constant 0 : i32
    %c0_i32_0 = arith.constant 0 : i32
    %c0_i32_1 = arith.constant 0 : i32
    return %c0_i32, %c0_i32_0 : i32, i32
  }
  func.func @transform_7(%arg0: i32, %arg1: i32) -> (i32, i32) {
    %c0_i32 = arith.constant 0 : i32
    %c0_i32_0 = arith.constant 0 : i32
    return %arg0, %c0_i32 : i32, i32
  }
}

</mosaic_0001>

<llo_original>
// kernel: gcn_forward.5
$region0: #{gcn_forward.5}
  #allocation0 [shape = 'u32[]', space=smem, size = 0x4, offset = 0x4, fixed_abs, tag = 'smem constant byte address 0x4 - core index']
  #allocation1 [shape = 'u32[72,128]{1,0:T(1,128)}', space=vmem, size = 0x9000, scoped, tag = 'internal scratch']
  %s0 = inlined_call_operand.vmem [shape: f32[8,128], index: 0, kind: input, shape index: {}]
  %s1 = inlined_call_operand.vmem [shape: f32[8,1], index: 1, kind: input, shape index: {}]
  %s2 = inlined_call_operand.vmem [shape: f32[128,128], index: 2, kind: input, shape index: {}]
  %s3 = inlined_call_operand.vmem [shape: f32[128,128], index: 3, kind: input, shape index: {}]
  %s4 = inlined_call_operand.vmem [shape: f32[1,128], index: 4, kind: input, shape index: {}]
  %s5 = inlined_call_operand.vmem [shape: f32[8,128], index: 5, kind: output, shape index: {}]
  %s6 = sld [smem:[#allocation0]]
  $region30: #{gcn_forward.5} parent=0
    _
  %s8 = ssub.s32 1, %s6
  %s9 = scalar_select 0, %s8, %s6
  // Predicated region
  $region2: #{gcn_forward.5} parent=0 // pred_check
    _
  $region3: #{gcn_forward.5} parent=0 // pred_check_branch
    %11 = sbr.rel (0) target = $region5
  $region4: #{gcn_forward.5} parent=0 // pred_region
    _
  $region5: #{gcn_forward.5} parent=0 // pred_fallthru
    _
  // Predicated region
  $region6: #{gcn_forward.5} parent=0 // pred_check
    _
  $region7: #{gcn_forward.5} parent=0 // pred_check_branch
    %13 = sbr.rel (0) target = $region9
  $region8: #{gcn_forward.5} parent=0 // pred_region
    _
  $region9: #{gcn_forward.5} parent=0 // pred_fallthru
    _
  // Predicated region
  $region10: #{gcn_forward.5} parent=0 // pred_check
    _
  $region11: #{gcn_forward.5} parent=0 // pred_check_branch
    %15 = sbr.rel (0) target = $region13
  $region12: #{gcn_forward.5} parent=0 // pred_region
    _
  $region13: #{gcn_forward.5} parent=0 // pred_fallthru
    _
  // Predicated region
  $region14: #{gcn_forward.5} parent=0 // pred_check
    _
  $region15: #{gcn_forward.5} parent=0 // pred_check_branch
    %17 = sbr.rel (0) target = $region17
  $region16: #{gcn_forward.5} parent=0 // pred_region
    _
  $region17: #{gcn_forward.5} parent=0 // pred_fallthru
    _
  // Predicated region
  $region18: #{gcn_forward.5} parent=0 // pred_check
    _
  $region19: #{gcn_forward.5} parent=0 // pred_check_branch
    %19 = sbr.rel (0) target = $region21
  $region20: #{gcn_forward.5} parent=0 // pred_region
    _
  $region21: #{gcn_forward.5} parent=0 // pred_fallthru
    _
  %v20 = vld [vmem:[%s0] sm:$0xff]
  %v21 = vld [vmem:[%s2] sm:$0xff]
  %v22 = vld [vmem:[%s2 + $0x8] sm:$0xff]
  %v23 = vld [vmem:[%s2 + $0x10] sm:$0xff]
  %v24 = vld [vmem:[%s2 + $0x18] sm:$0xff]
  %v25 = vld [vmem:[%s2 + $0x20] sm:$0xff]
  %v26 = vld [vmem:[%s2 + $0x28] sm:$0xff]
  %v27 = vld [vmem:[%s2 + $0x30] sm:$0xff]
  %v28 = vld [vmem:[%s2 + $0x38] sm:$0xff]
  %v29 = vld [vmem:[%s2 + $0x40] sm:$0xff]
  %v30 = vld [vmem:[%s2 + $0x48] sm:$0xff]
  %v31 = vld [vmem:[%s2 + $0x50] sm:$0xff]
  %v32 = vld [vmem:[%s2 + $0x58] sm:$0xff]
  %v33 = vld [vmem:[%s2 + $0x60] sm:$0xff]
  %v34 = vld [vmem:[%s2 + $0x68] sm:$0xff]
  %v35 = vld [vmem:[%s2 + $0x70] sm:$0xff]
  %v36 = vld [vmem:[%s2 + $0x78] sm:$0xff]
  %37 = vmatpush.msra.mxu0 %v36
  %38 = vmatpush.msra.mxu0 %v35
  %39 = vmatpush.msra.mxu0 %v34
  %40 = vmatpush.msra.mxu0 %v33
  %41 = vmatpush.msra.mxu0 %v32
  %42 = vmatpush.msra.mxu0 %v31
  %43 = vmatpush.msra.mxu0 %v30
  %44 = vmatpush.msra.mxu0 %v29
  %45 = vmatpush.msra.mxu0 %v28
  %46 = vmatpush.msra.mxu0 %v27
  %47 = vmatpush.msra.mxu0 %v26
  %48 = vmatpush.msra.mxu0 %v25
  %49 = vmatpush.msra.mxu0 %v24
  %50 = vmatpush.msra.mxu0 %v23
  %51 = vmatpush.msra.mxu0 %v22
  %52 = vmatpush.msra.mxu0 %v21
  %53 = vmatmul.f32.gmra.mxu0 %v20
  %v54 = vpop.f32.mrf.mxu0
  %v55 = vadd.f32 0.0, %v54
  %56 = vdwg.mxu0
  %v57 = vld [vmem:[%s1] sm:$0xff]
  %59 = vset.pattern.permute.xlu0 0
  %60 = vperm.xlu0 %59, %v57
  %v61 = vpop.permute.xlu0 %60
  %v63 = vmul.f32 %v55, %v61
  %v64 = vld [vmem:[%s3] sm:$0xff]
  %v65 = vld [vmem:[%s3 + $0x8] sm:$0xff]
  %v66 = vld [vmem:[%s3 + $0x10] sm:$0xff]
  %v67 = vld [vmem:[%s3 + $0x18] sm:$0xff]
  %v68 = vld [vmem:[%s3 + $0x20] sm:$0xff]
  %v69 = vld [vmem:[%s3 + $0x28] sm:$0xff]
  %v70 = vld [vmem:[%s3 + $0x30] sm:$0xff]
  %v71 = vld [vmem:[%s3 + $0x38] sm:$0xff]
  %v72 = vld [vmem:[%s3 + $0x40] sm:$0xff]
  %v73 = vld [vmem:[%s3 + $0x48] sm:$0xff]
  %v74 = vld [vmem:[%s3 + $0x50] sm:$0xff]
  %v75 = vld [vmem:[%s3 + $0x58] sm:$0xff]
  %v76 = vld [vmem:[%s3 + $0x60] sm:$0xff]
  %v77 = vld [vmem:[%s3 + $0x68] sm:$0xff]
  %v78 = vld [vmem:[%s3 + $0x70] sm:$0xff]
  %v79 = vld [vmem:[%s3 + $0x78] sm:$0xff]
  %v80 = vld [vmem:[%s4] sm:$0x1]
  %v82 = vperm.slane %v80, 0
  %84 = vmatpush.msra.mxu0 %v79
  %85 = vmatpush.msra.mxu0 %v78
  %86 = vmatpush.msra.mxu0 %v77
  %87 = vmatpush.msra.mxu0 %v76
  %88 = vmatpush.msra.mxu0 %v75
  %89 = vmatpush.msra.mxu0 %v74
  %90 = vmatpush.msra.mxu0 %v73
  %91 = vmatpush.msra.mxu0 %v72
  %92 = vmatpush.msra.mxu0 %v71
  %93 = vmatpush.msra.mxu0 %v70
  %94 = vmatpush.msra.mxu0 %v69
  %95 = vmatpush.msra.mxu0 %v68
  %96 = vmatpush.msra.mxu0 %v67
  %97 = vmatpush.msra.mxu0 %v66
  %98 = vmatpush.msra.mxu0 %v65
  %99 = vmatpush.msra.mxu0 %v64
  %100 = vmatmul.f32.gmra.mxu0 %v63
  %v101 = vpop.f32.mrf.mxu0
  %v102 = vadd.f32 %v82, %v101
  %103 = vdwg.mxu0
  %104 = vst [vmem:[%s5] sm:$0xff] %v102
  // Predicated region
  $region22: #{gcn_forward.5} parent=0 // pred_check
    _
  $region23: #{gcn_forward.5} parent=0 // pred_check_branch
    %106 = sbr.rel (0) target = $region25
  $region24: #{gcn_forward.5} parent=0 // pred_region
    _
  $region25: #{gcn_forward.5} parent=0 // pred_fallthru
    _
  // Predicated region
  $region26: #{gcn_forward.5} parent=0 // pred_check
    _
  $region27: #{gcn_forward.5} parent=0 // pred_check_branch
    %108 = sbr.rel (0) target = $region29
  $region28: #{gcn_forward.5} parent=0 // pred_region
    _
  $region29: #{gcn_forward.5} parent=0 // pred_fallthru
    _

// kernel: gcn_forward.4
$region0: #{gcn_forward.4}
  #allocation0 [shape = 'u32[]', space=smem, size = 0x4, offset = 0x4, fixed_abs, tag = 'smem constant byte address 0x4 - core index']
  #allocation1 [shape = 'u32[72,128]{1,0:T(1,128)}', space=vmem, size = 0x9000, scoped, tag = 'internal scratch']
  #allocation2 [shape = 'f32[128,128]{1,0:T(8,128)}', space=vmem, size = 0x10000, scoped, tag = 'scratch operand']
  %s0 = inlined_call_operand.vmem [shape: s8[128,128], index: 0, kind: input, shape index: {}]
  %s1 = inlined_call_operand.vmem [shape: bf16[128,128], index: 1, kind: input, shape index: {}, may-alias: {1,2}]
  %s2 = inlined_call_operand.vmem [shape: bf16[128,128], index: 2, kind: input, shape index: {}, may-alias: {1,2}]
  %s3 = inlined_call_operand.vmem [shape: f32[128,1], index: 3, kind: input, shape index: {}]
  %s4 = inlined_call_operand.vmem [shape: bf16[128,128], index: 4, kind: input, shape index: {}]
  %s5 = inlined_call_operand.vmem [shape: bf16[128,128], index: 5, kind: input, shape index: {}]
  %s6 = inlined_call_operand.vmem [shape: f32[1,128], index: 6, kind: input, shape index: {}]
  %s7 = inlined_call_operand.vmem [shape: f32[128,128], index: 7, kind: output, shape index: {}]
  %s8 = sld [smem:[#allocation0]]
  $region46: #{gcn_forward.4} parent=0
    _
  %s10 = ssub.s32 1, %s8
  %s11 = scalar_select 0, %s10, %s8
  // Predicated region
  $region2: #{gcn_forward.4} parent=0 // pred_check
    _
  $region3: #{gcn_forward.4} parent=0 // pred_check_branch
    %13 = sbr.rel (0) target = $region5
  $region4: #{gcn_forward.4} parent=0 // pred_region
    _
  $region5: #{gcn_forward.4} parent=0 // pred_fallthru
    _
  // Predicated region
  $region6: #{gcn_forward.4} parent=0 // pred_check
    _
  $region7: #{gcn_forward.4} parent=0 // pred_check_branch
    %15 = sbr.rel (0) target = $region9
  $region8: #{gcn_forward.4} parent=0 // pred_region
    _
  $region9: #{gcn_forward.4} parent=0 // pred_fallthru
    _
  // Predicated region
  $region10: #{gcn_forward.4} parent=0 // pred_check
    _
  $region11: #{gcn_forward.4} parent=0 // pred_check_branch
    %17 = sbr.rel (0) target = $region13
  $region12: #{gcn_forward.4} parent=0 // pred_region
    _
  $region13: #{gcn_forward.4} parent=0 // pred_fallthru
    _
  // Predicated region
  $region14: #{gcn_forward.4} parent=0 // pred_check
    _
  $region15: #{gcn_forward.4} parent=0 // pred_check_branch
    %19 = sbr.rel (0) target = $region17
  $region16: #{gcn_forward.4} parent=0 // pred_region
    _
  $region17: #{gcn_forward.4} parent=0 // pred_fallthru
    _
  // Predicated region
  $region18: #{gcn_forward.4} parent=0 // pred_check
    _
  $region19: #{gcn_forward.4} parent=0 // pred_check_branch
    %21 = sbr.rel (0) target = $region21
  $region20: #{gcn_forward.4} parent=0 // pred_region
    _
  $region21: #{gcn_forward.4} parent=0 // pred_fallthru
    _
  // Predicated region
  $region22: #{gcn_forward.4} parent=0 // pred_check
    _
  $region23: #{gcn_forward.4} parent=0 // pred_check_branch
    %23 = sbr.rel (0) target = $region25
  $region24: #{gcn_forward.4} parent=0 // pred_region
    _
  $region25: #{gcn_forward.4} parent=0 // pred_fallthru
    _
  // Predicated region
  $region26: #{gcn_forward.4} parent=0 // pred_check
    _
  $region27: #{gcn_forward.4} parent=0 // pred_check_branch
    %25 = sbr.rel (0) target = $region29
  $region28: #{gcn_forward.4} parent=0 // pred_region
    _
  $region29: #{gcn_forward.4} parent=0 // pred_fallthru
    _
  %p26 = scmp.eq.s32.totalorder 0, 0
  // Predicated region
  $region30: #{gcn_forward.4} parent=0 // pred_check
    %p27 = pneg %p26
  $region31: #{gcn_forward.4} parent=0 // pred_check_branch
    %29 = sbr.rel (%p27) target = $region33
  $region32: #{gcn_forward.4} parent=0 // pred_region
    %30 = vst [vmem:[#allocation2] sm:$0xff] 0.0
    %31 = vst [vmem:[#allocation2 + $0x8] sm:$0xff] 0.0
    %32 = vst [vmem:[#allocation2 + $0x10] sm:$0xff] 0.0
    %33 = vst [vmem:[#allocation2 + $0x18] sm:$0xff] 0.0
    %34 = vst [vmem:[#allocation2 + $0x20] sm:$0xff] 0.0
    %35 = vst [vmem:[#allocation2 + $0x28] sm:$0xff] 0.0
    %36 = vst [vmem:[#allocation2 + $0x30] sm:$0xff] 0.0
    %37 = vst [vmem:[#allocation2 + $0x38] sm:$0xff] 0.0
    %38 = vst [vmem:[#allocation2 + $0x40] sm:$0xff] 0.0
    %39 = vst [vmem:[#allocation2 + $0x48] sm:$0xff] 0.0
    %40 = vst [vmem:[#allocation2 + $0x50] sm:$0xff] 0.0
    %41 = vst [vmem:[#allocation2 + $0x58] sm:$0xff] 0.0
    %42 = vst [vmem:[#allocation2 + $0x60] sm:$0xff] 0.0
    %43 = vst [vmem:[#allocation2 + $0x68] sm:$0xff] 0.0
    %44 = vst [vmem:[#allocation2 + $0x70] sm:$0xff] 0.0
    %45 = vst [vmem:[#allocation2 + $0x78] sm:$0xff] 0.0
  $region33: #{gcn_forward.4} parent=0 // pred_fallthru
    _
  %v46 = vld [vmem:[#allocation2] sm:$0xff]
  %v47 = vld [vmem:[#allocation2 + $0x8] sm:$0xff]
  %v48 = vld [vmem:[#allocation2 + $0x10] sm:$0xff]
  %v49 = vld [vmem:[#allocation2 + $0x18] sm:$0xff]
  %v50 = vld [vmem:[#allocation2 + $0x20] sm:$0xff]
  %v51 = vld [vmem:[#allocation2 + $0x28] sm:$0xff]
  %v52 = vld [vmem:[#allocation2 + $0x30] sm:$0xff]
  %v53 = vld [vmem:[#allocation2 + $0x38] sm:$0xff]
  %v54 = vld [vmem:[#allocation2 + $0x40] sm:$0xff]
  %v55 = vld [vmem:[#allocation2 + $0x48] sm:$0xff]
  %v56 = vld [vmem:[#allocation2 + $0x50] sm:$0xff]
  %v57 = vld [vmem:[#allocation2 + $0x58] sm:$0xff]
  %v58 = vld [vmem:[#allocation2 + $0x60] sm:$0xff]
  %v59 = vld [vmem:[#allocation2 + $0x68] sm:$0xff]
  %v60 = vld [vmem:[#allocation2 + $0x70] sm:$0xff]
  %v61 = vld [vmem:[#allocation2 + $0x78] sm:$0xff]
  %v62 = vld [vmem:[%s0] sm:$0xff]
  %v63 = vld [vmem:[%s0 + $0x8] sm:$0xff]
  %v64 = vld [vmem:[%s0 + $0x10] sm:$0xff]
  %v65 = vld [vmem:[%s0 + $0x18] sm:$0xff]
  %v66 = vunpack.c.0.s8 %v62
  %v67 = vunpack.c.1.s8 %v62
  %v68 = vunpack.c.2.s8 %v62
  %v69 = vunpack.c.3.s8 %v62
  %v70 = vunpack.c.0.s8 %v63
  %v71 = vunpack.c.1.s8 %v63
  %v72 = vunpack.c.2.s8 %v63
  %v73 = vunpack.c.3.s8 %v63
  %v74 = vunpack.c.0.s8 %v64
  %v75 = vunpack.c.1.s8 %v64
  %v76 = vunpack.c.2.s8 %v64
  %v77 = vunpack.c.3.s8 %v64
  %v78 = vunpack.c.0.s8 %v65
  %v79 = vunpack.c.1.s8 %v65
  %v80 = vunpack.c.2.s8 %v65
  %v81 = vunpack.c.3.s8 %v65
  %v82 = vcvt.s32.f32 %v66
  %v83 = vcvt.s32.f32 %v67
  %v84 = vcvt.s32.f32 %v68
  %v85 = vcvt.s32.f32 %v69
  %v86 = vcvt.s32.f32 %v70
  %v87 = vcvt.s32.f32 %v71
  %v88 = vcvt.s32.f32 %v72
  %v89 = vcvt.s32.f32 %v73
  %v90 = vcvt.s32.f32 %v74
  %v91 = vcvt.s32.f32 %v75
  %v92 = vcvt.s32.f32 %v76
  %v93 = vcvt.s32.f32 %v77
  %v94 = vcvt.s32.f32 %v78
  %v95 = vcvt.s32.f32 %v79
  %v96 = vcvt.s32.f32 %v80
  %v97 = vcvt.s32.f32 %v81
  %v98 = vpack.c.bf16 %v83, %v82
  %v99 = vpack.c.bf16 %v85, %v84
  %v100 = vpack.c.bf16 %v87, %v86
  %v101 = vpack.c.bf16 %v89, %v88
  %v102 = vpack.c.bf16 %v91, %v90
  %v103 = vpack.c.bf16 %v93, %v92
  %v104 = vpack.c.bf16 %v95, %v94
  %v105 = vpack.c.bf16 %v97, %v96
  %v106 = vld [vmem:[%s1] sm:$0xf]
  %v107 = vld [vmem:[%s1 + $0x4] sm:$0xf]
  %v108 = vld [vmem:[%s1 + $0x8] sm:$0xf]
  %v109 = vld [vmem:[%s1 + $0xc] sm:$0xf]
  %v110 = vld [vmem:[%s1 + $0x10] sm:$0xf]
  %v111 = vld [vmem:[%s1 + $0x14] sm:$0xf]
  %v112 = vld [vmem:[%s1 + $0x18] sm:$0xf]
  %v113 = vld [vmem:[%s1 + $0x1c] sm:$0xf]
  %v114 = vld [vmem:[%s1 + $0x20] sm:$0xf]
  %v115 = vld [vmem:[%s1 + $0x24] sm:$0xf]
  %v116 = vld [vmem:[%s1 + $0x28] sm:$0xf]
  %v117 = vld [vmem:[%s1 + $0x2c] sm:$0xf]
  %v118 = vld [vmem:[%s1 + $0x30] sm:$0xf]
  %v119 = vld [vmem:[%s1 + $0x34] sm:$0xf]
  %v120 = vld [vmem:[%s1 + $0x38] sm:$0xf]
  %v121 = vld [vmem:[%s1 + $0x3c] sm:$0xf]
  %v138 = vunpack.c.l.b16 %v106
  %v139 = vunpack.c.l.b16 %v107
  %v140 = vunpack.c.l.b16 %v108
  %v141 = vunpack.c.l.b16 %v109
  %v142 = vunpack.c.l.b16 %v110
  %v143 = vunpack.c.l.b16 %v111
  %v144 = vunpack.c.l.b16 %v112
  %v145 = vunpack.c.l.b16 %v113
  %v146 = vunpack.c.l.b16 %v114
  %v147 = vunpack.c.l.b16 %v115
  %v148 = vunpack.c.l.b16 %v116
  %v149 = vunpack.c.l.b16 %v117
  %v150 = vunpack.c.l.b16 %v118
  %v151 = vunpack.c.l.b16 %v119
  %v152 = vunpack.c.l.b16 %v120
  %v153 = vunpack.c.l.b16 %v121
  %v154 = vpack.c.b16 %v139, %v138
  %v155 = vpack.c.b16 %v141, %v140
  %v156 = vpack.c.b16 %v143, %v142
  %v157 = vpack.c.b16 %v145, %v144
  %v158 = vpack.c.b16 %v147, %v146
  %v159 = vpack.c.b16 %v149, %v148
  %v160 = vpack.c.b16 %v151, %v150
  %v161 = vpack.c.b16 %v153, %v152
  %170 = vmatpush.bf16.msra.mxu0 %v161
  %171 = vmatpush.bf16.msra.mxu0 %v160
  %172 = vmatpush.bf16.msra.mxu0 %v159
  %173 = vmatpush.bf16.msra.mxu0 %v158
  %174 = vmatpush.bf16.msra.mxu0 %v157
  %175 = vmatpush.bf16.msra.mxu0 %v156
  %176 = vmatpush.bf16.msra.mxu0 %v155
  %177 = vmatpush.bf16.msra.mxu0 %v154
  %178 = vmatmul.bf16.gmra.mxu0 %v98
  %v179 = vpop.f32.mrf.mxu0
  %v180 = vadd.f32 0.0, %v179
  %v181 = vpop.f32.mrf.mxu0
  %v182 = vadd.f32 0.0, %v181
  %183 = vmatmul.bf16.gmra.mxu0 %v99
  %v184 = vpop.f32.mrf.mxu0
  %v185 = vadd.f32 0.0, %v184
  %v186 = vpop.f32.mrf.mxu0
  %v187 = vadd.f32 0.0, %v186
  %188 = vmatmul.bf16.gmra.mxu0 %v100
  %v189 = vpop.f32.mrf.mxu0
  %v190 = vadd.f32 0.0, %v189
  %v191 = vpop.f32.mrf.mxu0
  %v192 = vadd.f32 0.0, %v191
  %193 = vmatmul.bf16.gmra.mxu0 %v101
  %v194 = vpop.f32.mrf.mxu0
  %v195 = vadd.f32 0.0, %v194
  %v196 = vpop.f32.mrf.mxu0
  %v197 = vadd.f32 0.0, %v196
  %198 = vmatmul.bf16.gmra.mxu0 %v102
  %v199 = vpop.f32.mrf.mxu0
  %v200 = vadd.f32 0.0, %v199
  %v201 = vpop.f32.mrf.mxu0
  %v202 = vadd.f32 0.0, %v201
  %203 = vmatmul.bf16.gmra.mxu0 %v103
  %v204 = vpop.f32.mrf.mxu0
  %v205 = vadd.f32 0.0, %v204
  %v206 = vpop.f32.mrf.mxu0
  %v207 = vadd.f32 0.0, %v206
  %208 = vmatmul.bf16.gmra.mxu0 %v104
  %v209 = vpop.f32.mrf.mxu0
  %v210 = vadd.f32 0.0, %v209
  %v211 = vpop.f32.mrf.mxu0
  %v212 = vadd.f32 0.0, %v211
  %213 = vmatmul.bf16.gmra.mxu0 %v105
  %v214 = vpop.f32.mrf.mxu0
  %v215 = vadd.f32 0.0, %v214
  %v216 = vpop.f32.mrf.mxu0
  %v217 = vadd.f32 0.0, %v216
  %218 = vdwg.mxu0
  %v219 = vadd.f32 %v46, %v180
  %v220 = vadd.f32 %v47, %v182
  %v221 = vadd.f32 %v48, %v185
  %v222 = vadd.f32 %v49, %v187
  %v223 = vadd.f32 %v50, %v190
  %v224 = vadd.f32 %v51, %v192
  %v225 = vadd.f32 %v52, %v195
  %v226 = vadd.f32 %v53, %v197
  %v227 = vadd.f32 %v54, %v200
  %v228 = vadd.f32 %v55, %v202
  %v229 = vadd.f32 %v56, %v205
  %v230 = vadd.f32 %v57, %v207
  %v231 = vadd.f32 %v58, %v210
  %v232 = vadd.f32 %v59, %v212
  %v233 = vadd.f32 %v60, %v215
  %v234 = vadd.f32 %v61, %v217
  %235 = vst [vmem:[#allocation2] sm:$0xff] %v219
  %236 = vst [vmem:[#allocation2 + $0x8] sm:$0xff] %v220
  %237 = vst [vmem:[#allocation2 + $0x10] sm:$0xff] %v221
  %238 = vst [vmem:[#allocation2 + $0x18] sm:$0xff] %v222
  %239 = vst [vmem:[#allocation2 + $0x20] sm:$0xff] %v223
  %240 = vst [vmem:[#allocation2 + $0x28] sm:$0xff] %v224
  %241 = vst [vmem:[#allocation2 + $0x30] sm:$0xff] %v225
  %242 = vst [vmem:[#allocation2 + $0x38] sm:$0xff] %v226
  %243 = vst [vmem:[#allocation2 + $0x40] sm:$0xff] %v227
  %244 = vst [vmem:[#allocation2 + $0x48] sm:$0xff] %v228
  %245 = vst [vmem:[#allocation2 + $0x50] sm:$0xff] %v229
  %246 = vst [vmem:[#allocation2 + $0x58] sm:$0xff] %v230
  %247 = vst [vmem:[#allocation2 + $0x60] sm:$0xff] %v231
  %248 = vst [vmem:[#allocation2 + $0x68] sm:$0xff] %v232
  %249 = vst [vmem:[#allocation2 + $0x70] sm:$0xff] %v233
  %250 = vst [vmem:[#allocation2 + $0x78] sm:$0xff] %v234
  // Predicated region
  $region34: #{gcn_forward.4} parent=0 // pred_check
    %p251 = pneg %p26
  $region35: #{gcn_forward.4} parent=0 // pred_check_branch
    %253 = sbr.rel (%p251) target = $region37
  $region36: #{gcn_forward.4} parent=0 // pred_region
    %v254 = vld [vmem:[#allocation2] sm:$0xff]
    %v255 = vld [vmem:[#allocation2 + $0x8] sm:$0xff]
    %v256 = vld [vmem:[#allocation2 + $0x10] sm:$0xff]
    %v257 = vld [vmem:[#allocation2 + $0x18] sm:$0xff]
    %v258 = vld [vmem:[#allocation2 + $0x20] sm:$0xff]
    %v259 = vld [vmem:[#allocation2 + $0x28] sm:$0xff]
    %v260 = vld [vmem:[#allocation2 + $0x30] sm:$0xff]
    %v261 = vld [vmem:[#allocation2 + $0x38] sm:$0xff]
    %v262 = vld [vmem:[#allocation2 + $0x40] sm:$0xff]
    %v263 = vld [vmem:[#allocation2 + $0x48] sm:$0xff]
    %v264 = vld [vmem:[#allocation2 + $0x50] sm:$0xff]
    %v265 = vld [vmem:[#allocation2 + $0x58] sm:$0xff]
    %v266 = vld [vmem:[#allocation2 + $0x60] sm:$0xff]
    %v267 = vld [vmem:[#allocation2 + $0x68] sm:$0xff]
    %v268 = vld [vmem:[#allocation2 + $0x70] sm:$0xff]
    %v269 = vld [vmem:[#allocation2 + $0x78] sm:$0xff]
    %v270 = vld [vmem:[%s3] sm:$0xff]
    %v271 = vld [vmem:[%s3 + $0x8] sm:$0xff]
    %v272 = vld [vmem:[%s3 + $0x10] sm:$0xff]
    %v273 = vld [vmem:[%s3 + $0x18] sm:$0xff]
    %v274 = vld [vmem:[%s3 + $0x20] sm:$0xff]
    %v275 = vld [vmem:[%s3 + $0x28] sm:$0xff]
    %v276 = vld [vmem:[%s3 + $0x30] sm:$0xff]
    %v277 = vld [vmem:[%s3 + $0x38] sm:$0xff]
    %v278 = vld [vmem:[%s3 + $0x40] sm:$0xff]
    %v279 = vld [vmem:[%s3 + $0x48] sm:$0xff]
    %v280 = vld [vmem:[%s3 + $0x50] sm:$0xff]
    %v281 = vld [vmem:[%s3 + $0x58] sm:$0xff]
    %v282 = vld [vmem:[%s3 + $0x60] sm:$0xff]
    %v283 = vld [vmem:[%s3 + $0x68] sm:$0xff]
    %v284 = vld [vmem:[%s3 + $0x70] sm:$0xff]
    %v285 = vld [vmem:[%s3 + $0x78] sm:$0xff]
    %287 = vset.pattern.permute.xlu0 0
    %288 = vperm.xlu0 %287, %v270
    %v289 = vpop.permute.xlu0 %288
    %292 = vset.pattern.permute.xlu0 0
    %293 = vperm.xlu0 %292, %v271
    %v294 = vpop.permute.xlu0 %293
    %297 = vset.pattern.permute.xlu0 0
    %298 = vperm.xlu0 %297, %v272
    %v299 = vpop.permute.xlu0 %298
    %302 = vset.pattern.permute.xlu0 0
    %303 = vperm.xlu0 %302, %v273
    %v304 = vpop.permute.xlu0 %303
    %307 = vset.pattern.permute.xlu0 0
    %308 = vperm.xlu0 %307, %v274
    %v309 = vpop.permute.xlu0 %308
    %312 = vset.pattern.permute.xlu0 0
    %313 = vperm.xlu0 %312, %v275
    %v314 = vpop.permute.xlu0 %313
    %317 = vset.pattern.permute.xlu0 0
    %318 = vperm.xlu0 %317, %v276
    %v319 = vpop.permute.xlu0 %318
    %322 = vset.pattern.permute.xlu0 0
    %323 = vperm.xlu0 %322, %v277
    %v324 = vpop.permute.xlu0 %323
    %327 = vset.pattern.permute.xlu0 0
    %328 = vperm.xlu0 %327, %v278
    %v329 = vpop.permute.xlu0 %328
    %332 = vset.pattern.permute.xlu0 0
    %333 = vperm.xlu0 %332, %v279
    %v334 = vpop.permute.xlu0 %333
    %337 = vset.pattern.permute.xlu0 0
    %338 = vperm.xlu0 %337, %v280
    %v339 = vpop.permute.xlu0 %338
    %342 = vset.pattern.permute.xlu0 0
    %343 = vperm.xlu0 %342, %v281
    %v344 = vpop.permute.xlu0 %343
    %347 = vset.pattern.permute.xlu0 0
    %348 = vperm.xlu0 %347, %v282
    %v349 = vpop.permute.xlu0 %348
    %352 = vset.pattern.permute.xlu0 0
    %353 = vperm.xlu0 %352, %v283
    %v354 = vpop.permute.xlu0 %353
    %357 = vset.pattern.permute.xlu0 0
    %358 = vperm.xlu0 %357, %v284
    %v359 = vpop.permute.xlu0 %358
    %362 = vset.pattern.permute.xlu0 0
    %363 = vperm.xlu0 %362, %v285
    %v364 = vpop.permute.xlu0 %363
    %v366 = vmul.f32 %v254, %v289
    %v367 = vmul.f32 %v255, %v294
    %v368 = vmul.f32 %v256, %v299
    %v369 = vmul.f32 %v257, %v304
    %v370 = vmul.f32 %v258, %v309
    %v371 = vmul.f32 %v259, %v314
    %v372 = vmul.f32 %v260, %v319
    %v373 = vmul.f32 %v261, %v324
    %v374 = vmul.f32 %v262, %v329
    %v375 = vmul.f32 %v263, %v334
    %v376 = vmul.f32 %v264, %v339
    %v377 = vmul.f32 %v265, %v344
    %v378 = vmul.f32 %v266, %v349
    %v379 = vmul.f32 %v267, %v354
    %v380 = vmul.f32 %v268, %v359
    %v381 = vmul.f32 %v269, %v364
    %v382 = vpack.c.bf16 %v367, %v366
    %v383 = vpack.c.bf16 %v369, %v368
    %v384 = vpack.c.bf16 %v371, %v370
    %v385 = vpack.c.bf16 %v373, %v372
    %v386 = vpack.c.bf16 %v375, %v374
    %v387 = vpack.c.bf16 %v377, %v376
    %v388 = vpack.c.bf16 %v379, %v378
    %v389 = vpack.c.bf16 %v381, %v380
    %v390 = vld [vmem:[%s4] sm:$0xf]
    %v391 = vld [vmem:[%s4 + $0x4] sm:$0xf]
    %v392 = vld [vmem:[%s4 + $0x8] sm:$0xf]
    %v393 = vld [vmem:[%s4 + $0xc] sm:$0xf]
    %v394 = vld [vmem:[%s4 + $0x10] sm:$0xf]
    %v395 = vld [vmem:[%s4 + $0x14] sm:$0xf]
    %v396 = vld [vmem:[%s4 + $0x18] sm:$0xf]
    %v397 = vld [vmem:[%s4 + $0x1c] sm:$0xf]
    %v398 = vld [vmem:[%s4 + $0x20] sm:$0xf]
    %v399 = vld [vmem:[%s4 + $0x24] sm:$0xf]
    %v400 = vld [vmem:[%s4 + $0x28] sm:$0xf]
    %v401 = vld [vmem:[%s4 + $0x2c] sm:$0xf]
    %v402 = vld [vmem:[%s4 + $0x30] sm:$0xf]
    %v403 = vld [vmem:[%s4 + $0x34] sm:$0xf]
    %v404 = vld [vmem:[%s4 + $0x38] sm:$0xf]
    %v405 = vld [vmem:[%s4 + $0x3c] sm:$0xf]
    %v406 = vld [vmem:[%s2] sm:$0xf]
    %v407 = vld [vmem:[%s2 + $0x4] sm:$0xf]
    %v408 = vld [vmem:[%s2 + $0x8] sm:$0xf]
    %v409 = vld [vmem:[%s2 + $0xc] sm:$0xf]
    %v410 = vld [vmem:[%s2 + $0x10] sm:$0xf]
    %v411 = vld [vmem:[%s2 + $0x14] sm:$0xf]
    %v412 = vld [vmem:[%s2 + $0x18] sm:$0xf]
    %v413 = vld [vmem:[%s2 + $0x1c] sm:$0xf]
    %v414 = vld [vmem:[%s2 + $0x20] sm:$0xf]
    %v415 = vld [vmem:[%s2 + $0x24] sm:$0xf]
    %v416 = vld [vmem:[%s2 + $0x28] sm:$0xf]
    %v417 = vld [vmem:[%s2 + $0x2c] sm:$0xf]
    %v418 = vld [vmem:[%s2 + $0x30] sm:$0xf]
    %v419 = vld [vmem:[%s2 + $0x34] sm:$0xf]
    %v420 = vld [vmem:[%s2 + $0x38] sm:$0xf]
    %v421 = vld [vmem:[%s2 + $0x3c] sm:$0xf]
    %v422 = vld [vmem:[%s5] sm:$0xf]
    %v423 = vld [vmem:[%s5 + $0x4] sm:$0xf]
    %v424 = vld [vmem:[%s5 + $0x8] sm:$0xf]
    %v425 = vld [vmem:[%s5 + $0xc] sm:$0xf]
    %v426 = vld [vmem:[%s5 + $0x10] sm:$0xf]
    %v427 = vld [vmem:[%s5 + $0x14] sm:$0xf]
    %v428 = vld [vmem:[%s5 + $0x18] sm:$0xf]
    %v429 = vld [vmem:[%s5 + $0x1c] sm:$0xf]
    %v430 = vld [vmem:[%s5 + $0x20] sm:$0xf]
    %v431 = vld [vmem:[%s5 + $0x24] sm:$0xf]
    %v432 = vld [vmem:[%s5 + $0x28] sm:$0xf]
    %v433 = vld [vmem:[%s5 + $0x2c] sm:$0xf]
    %v434 = vld [vmem:[%s5 + $0x30] sm:$0xf]
    %v435 = vld [vmem:[%s5 + $0x34] sm:$0xf]
    %v436 = vld [vmem:[%s5 + $0x38] sm:$0xf]
    %v437 = vld [vmem:[%s5 + $0x3c] sm:$0xf]
    %v454 = vunpack.c.l.b16 %v406
    %v455 = vunpack.c.l.b16 %v407
    %v456 = vunpack.c.l.b16 %v408
    %v457 = vunpack.c.l.b16 %v409
    %v458 = vunpack.c.l.b16 %v410
    %v459 = vunpack.c.l.b16 %v411
    %v460 = vunpack.c.l.b16 %v412
    %v461 = vunpack.c.l.b16 %v413
    %v462 = vunpack.c.l.b16 %v414
    %v463 = vunpack.c.l.b16 %v415
    %v464 = vunpack.c.l.b16 %v416
    %v465 = vunpack.c.l.b16 %v417
    %v466 = vunpack.c.l.b16 %v418
    %v467 = vunpack.c.l.b16 %v419
    %v468 = vunpack.c.l.b16 %v420
    %v469 = vunpack.c.l.b16 %v421
    %v470 = vpack.c.b16 %v455, %v454
    %v471 = vpack.c.b16 %v457, %v456
    %v472 = vpack.c.b16 %v459, %v458
    %v473 = vpack.c.b16 %v461, %v460
    %v474 = vpack.c.b16 %v463, %v462
    %v475 = vpack.c.b16 %v465, %v464
    %v476 = vpack.c.b16 %v467, %v466
    %v477 = vpack.c.b16 %v469, %v468
    %v502 = vunpack.c.l.b16 %v422
    %v503 = vunpack.c.l.b16 %v423
    %v504 = vunpack.c.l.b16 %v424
    %v505 = vunpack.c.l.b16 %v425
    %v506 = vunpack.c.l.b16 %v426
    %v507 = vunpack.c.l.b16 %v427
    %v508 = vunpack.c.l.b16 %v428
    %v509 = vunpack.c.l.b16 %v429
    %v510 = vunpack.c.l.b16 %v430
    %v511 = vunpack.c.l.b16 %v431
    %v512 = vunpack.c.l.b16 %v432
    %v513 = vunpack.c.l.b16 %v433
    %v514 = vunpack.c.l.b16 %v434
    %v515 = vunpack.c.l.b16 %v435
    %v516 = vunpack.c.l.b16 %v436
    %v517 = vunpack.c.l.b16 %v437
    %v518 = vpack.c.b16 %v503, %v502
    %v519 = vpack.c.b16 %v505, %v504
    %v520 = vpack.c.b16 %v507, %v506
    %v521 = vpack.c.b16 %v509, %v508
    %v522 = vpack.c.b16 %v511, %v510
    %v523 = vpack.c.b16 %v513, %v512
    %v524 = vpack.c.b16 %v515, %v514
    %v525 = vpack.c.b16 %v517, %v516
    %534 = vmatpush.bf16.msra.mxu0 %v525
    %535 = vmatpush.bf16.msra.mxu0 %v524
    %536 = vmatpush.bf16.msra.mxu0 %v523
    %537 = vmatpush.bf16.msra.mxu0 %v522
    %538 = vmatpush.bf16.msra.mxu0 %v521
    %539 = vmatpush.bf16.msra.mxu0 %v520
    %540 = vmatpush.bf16.msra.mxu0 %v519
    %541 = vmatpush.bf16.msra.mxu0 %v518
    %542 = vmatmul.bf16.gmra.mxu0 %v470
    %v543 = vpop.f32.mrf.mxu0
    %v544 = vadd.f32 0.0, %v543
    %v545 = vpop.f32.mrf.mxu0
    %v546 = vadd.f32 0.0, %v545
    %547 = vmatmul.bf16.gmra.mxu0 %v471
    %v548 = vpop.f32.mrf.mxu0
    %v549 = vadd.f32 0.0, %v548
    %v550 = vpop.f32.mrf.mxu0
    %v551 = vadd.f32 0.0, %v550
    %552 = vmatmul.bf16.gmra.mxu0 %v472
    %v553 = vpop.f32.mrf.mxu0
    %v554 = vadd.f32 0.0, %v553
    %v555 = vpop.f32.mrf.mxu0
    %v556 = vadd.f32 0.0, %v555
    %557 = vmatmul.bf16.gmra.mxu0 %v473
    %v558 = vpop.f32.mrf.mxu0
    %v559 = vadd.f32 0.0, %v558
    %v560 = vpop.f32.mrf.mxu0
    %v561 = vadd.f32 0.0, %v560
    %562 = vmatmul.bf16.gmra.mxu0 %v474
    %v563 = vpop.f32.mrf.mxu0
    %v564 = vadd.f32 0.0, %v563
    %v565 = vpop.f32.mrf.mxu0
    %v566 = vadd.f32 0.0, %v565
    %567 = vmatmul.bf16.gmra.mxu0 %v475
    %v568 = vpop.f32.mrf.mxu0
    %v569 = vadd.f32 0.0, %v568
    %v570 = vpop.f32.mrf.mxu0
    %v571 = vadd.f32 0.0, %v570
    %572 = vmatmul.bf16.gmra.mxu0 %v476
    %v573 = vpop.f32.mrf.mxu0
    %v574 = vadd.f32 0.0, %v573
    %v575 = vpop.f32.mrf.mxu0
    %v576 = vadd.f32 0.0, %v575
    %577 = vmatmul.bf16.gmra.mxu0 %v477
    %v578 = vpop.f32.mrf.mxu0
    %v579 = vadd.f32 0.0, %v578
    %v580 = vpop.f32.mrf.mxu0
    %v581 = vadd.f32 0.0, %v580
    %582 = vdwg.mxu0
    %v599 = vunpack.c.l.b16 %v390
    %v600 = vunpack.c.l.b16 %v391
    %v601 = vunpack.c.l.b16 %v392
    %v602 = vunpack.c.l.b16 %v393
    %v603 = vunpack.c.l.b16 %v394
    %v604 = vunpack.c.l.b16 %v395
    %v605 = vunpack.c.l.b16 %v396
    %v606 = vunpack.c.l.b16 %v397
    %v607 = vunpack.c.l.b16 %v398
    %v608 = vunpack.c.l.b16 %v399
    %v609 = vunpack.c.l.b16 %v400
    %v610 = vunpack.c.l.b16 %v401
    %v611 = vunpack.c.l.b16 %v402
    %v612 = vunpack.c.l.b16 %v403
    %v613 = vunpack.c.l.b16 %v404
    %v614 = vunpack.c.l.b16 %v405
    %v615 = vpack.c.b16 %v600, %v599
    %v616 = vpack.c.b16 %v602, %v601
    %v617 = vpack.c.b16 %v604, %v603
    %v618 = vpack.c.b16 %v606, %v605
    %v619 = vpack.c.b16 %v608, %v607
    %v620 = vpack.c.b16 %v610, %v609
    %v621 = vpack.c.b16 %v612, %v611
    %v622 = vpack.c.b16 %v614, %v613
    %631 = vmatpush.bf16.msra.mxu0 %v622
    %632 = vmatpush.bf16.msra.mxu0 %v621
    %633 = vmatpush.bf16.msra.mxu0 %v620
    %634 = vmatpush.bf16.msra.mxu0 %v619
    %635 = vmatpush.bf16.msra.mxu0 %v618
    %636 = vmatpush.bf16.msra.mxu0 %v617
    %637 = vmatpush.bf16.msra.mxu0 %v616
    %638 = vmatpush.bf16.msra.mxu0 %v615
    %639 = vmatmul.bf16.gmra.mxu0 %v382
    %v640 = vpop.f32.mrf.mxu0
    %v641 = vadd.f32 %v544, %v640
    %v642 = vpop.f32.mrf.mxu0
    %v643 = vadd.f32 %v546, %v642
    %644 = vmatmul.bf16.gmra.mxu0 %v383
    %v645 = vpop.f32.mrf.mxu0
    %v646 = vadd.f32 %v549, %v645
    %v647 = vpop.f32.mrf.mxu0
    %v648 = vadd.f32 %v551, %v647
    %649 = vmatmul.bf16.gmra.mxu0 %v384
    %v650 = vpop.f32.mrf.mxu0
    %v651 = vadd.f32 %v554, %v650
    %v652 = vpop.f32.mrf.mxu0
    %v653 = vadd.f32 %v556, %v652
    %654 = vmatmul.bf16.gmra.mxu0 %v385
    %v655 = vpop.f32.mrf.mxu0
    %v656 = vadd.f32 %v559, %v655
    %v657 = vpop.f32.mrf.mxu0
    %v658 = vadd.f32 %v561, %v657
    %659 = vmatmul.bf16.gmra.mxu0 %v386
    %v660 = vpop.f32.mrf.mxu0
    %v661 = vadd.f32 %v564, %v660
    %v662 = vpop.f32.mrf.mxu0
    %v663 = vadd.f32 %v566, %v662
    %664 = vmatmul.bf16.gmra.mxu0 %v387
    %v665 = vpop.f32.mrf.mxu0
    %v666 = vadd.f32 %v569, %v665
    %v667 = vpop.f32.mrf.mxu0
    %v668 = vadd.f32 %v571, %v667
    %669 = vmatmul.bf16.gmra.mxu0 %v388
    %v670 = vpop.f32.mrf.mxu0
    %v671 = vadd.f32 %v574, %v670
    %v672 = vpop.f32.mrf.mxu0
    %v673 = vadd.f32 %v576, %v672
    %674 = vmatmul.bf16.gmra.mxu0 %v389
    %v675 = vpop.f32.mrf.mxu0
    %v676 = vadd.f32 %v579, %v675
    %v677 = vpop.f32.mrf.mxu0
    %v678 = vadd.f32 %v581, %v677
    %679 = vdwg.mxu0
    %v680 = vld [vmem:[%s6] sm:$0x1]
    %v682 = vperm.slane %v680, 0
    %v684 = vadd.f32 %v641, %v682
    %v685 = vadd.f32 %v643, %v682
    %v686 = vadd.f32 %v646, %v682
    %v687 = vadd.f32 %v648, %v682
    %v688 = vadd.f32 %v651, %v682
    %v689 = vadd.f32 %v653, %v682
    %v690 = vadd.f32 %v656, %v682
    %v691 = vadd.f32 %v658, %v682
    %v692 = vadd.f32 %v661, %v682
    %v693 = vadd.f32 %v663, %v682
    %v694 = vadd.f32 %v666, %v682
    %v695 = vadd.f32 %v668, %v682
    %v696 = vadd.f32 %v671, %v682
    %v697 = vadd.f32 %v673, %v682
    %v698 = vadd.f32 %v676, %v682
    %v699 = vadd.f32 %v678, %v682
    %v700 = vmax.f32 %v684, 0.0
    %v701 = vmax.f32 %v685, 0.0
    %v702 = vmax.f32 %v686, 0.0
    %v703 = vmax.f32 %v687, 0.0
    %v704 = vmax.f32 %v688, 0.0
    %v705 = vmax.f32 %v689, 0.0
    %v706 = vmax.f32 %v690, 0.0
    %v707 = vmax.f32 %v691, 0.0
    %v708 = vmax.f32 %v692, 0.0
    %v709 = vmax.f32 %v693, 0.0
    %v710 = vmax.f32 %v694, 0.0
    %v711 = vmax.f32 %v695, 0.0
    %v712 = vmax.f32 %v696, 0.0
    %v713 = vmax.f32 %v697, 0.0
    %v714 = vmax.f32 %v698, 0.0
    %v715 = vmax.f32 %v699, 0.0
    %716 = vst [vmem:[%s7] sm:$0xff] %v700
    %717 = vst [vmem:[%s7 + $0x8] sm:$0xff] %v701
    %718 = vst [vmem:[%s7 + $0x10] sm:$0xff] %v702
    %719 = vst [vmem:[%s7 + $0x18] sm:$0xff] %v703
    %720 = vst [vmem:[%s7 + $0x20] sm:$0xff] %v704
    %721 = vst [vmem:[%s7 + $0x28] sm:$0xff] %v705
    %722 = vst [vmem:[%s7 + $0x30] sm:$0xff] %v706
    %723 = vst [vmem:[%s7 + $0x38] sm:$0xff] %v707
    %724 = vst [vmem:[%s7 + $0x40] sm:$0xff] %v708
    %725 = vst [vmem:[%s7 + $0x48] sm:$0xff] %v709
    %726 = vst [vmem:[%s7 + $0x50] sm:$0xff] %v710
    %727 = vst [vmem:[%s7 + $0x58] sm:$0xff] %v711
    %728 = vst [vmem:[%s7 + $0x60] sm:$0xff] %v712
    %729 = vst [vmem:[%s7 + $0x68] sm:$0xff] %v713
    %730 = vst [vmem:[%s7 + $0x70] sm:$0xff] %v714
    %731 = vst [vmem:[%s7 + $0x78] sm:$0xff] %v715
  $region37: #{gcn_forward.4} parent=0 // pred_fallthru
    _
  // Predicated region
  $region38: #{gcn_forward.4} parent=0 // pred_check
    _
  $region39: #{gcn_forward.4} parent=0 // pred_check_branch
    %733 = sbr.rel (0) target = $region41
  $region40: #{gcn_forward.4} parent=0 // pred_region
    _
  $region41: #{gcn_forward.4} parent=0 // pred_fallthru
    _
  // Predicated region
  $region42: #{gcn_forward.4} parent=0 // pred_check
    _
  $region43: #{gcn_forward.4} parent=0 // pred_check_branch
    %735 = sbr.rel (0) target = $region45
  $region44: #{gcn_forward.4} parent=0 // pred_region
    _
  $region45: #{gcn_forward.4} parent=0 // pred_fallthru
    _

// kernel: gcn_forward.3
$region0: #{gcn_forward.3}
  #allocation0 [shape = 'u32[]', space=smem, size = 0x4, offset = 0x4, fixed_abs, tag = 'smem constant byte address 0x4 - core index']
  #allocation1 [shape = 'u32[72,128]{1,0:T(1,128)}', space=vmem, size = 0x9000, scoped, tag = 'internal scratch']
  #allocation2 [shape = 'f32[128,128]{1,0:T(8,128)}', space=vmem, size = 0x10000, scoped, tag = 'scratch operand']
  %s0 = inlined_call_operand.vmem [shape: s8[128,128], index: 0, kind: input, shape index: {}]
  %s1 = inlined_call_operand.vmem [shape: bf16[128,128], index: 1, kind: input, shape index: {}, may-alias: {1,2}]
  %s2 = inlined_call_operand.vmem [shape: bf16[128,128], index: 2, kind: input, shape index: {}, may-alias: {1,2}]
  %s3 = inlined_call_operand.vmem [shape: f32[128,1], index: 3, kind: input, shape index: {}]
  %s4 = inlined_call_operand.vmem [shape: bf16[128,128], index: 4, kind: input, shape index: {}]
  %s5 = inlined_call_operand.vmem [shape: bf16[128,128], index: 5, kind: input, shape index: {}]
  %s6 = inlined_call_operand.vmem [shape: f32[1,128], index: 6, kind: input, shape index: {}]
  %s7 = inlined_call_operand.vmem [shape: bf16[128,128], index: 7, kind: output, shape index: {}]
  %s8 = sld [smem:[#allocation0]]
  $region46: #{gcn_forward.3} parent=0
    _
  %s10 = ssub.s32 1, %s8
  %s11 = scalar_select 0, %s10, %s8
  // Predicated region
  $region2: #{gcn_forward.3} parent=0 // pred_check
    _
  $region3: #{gcn_forward.3} parent=0 // pred_check_branch
    %13 = sbr.rel (0) target = $region5
  $region4: #{gcn_forward.3} parent=0 // pred_region
    _
  $region5: #{gcn_forward.3} parent=0 // pred_fallthru
    _
  // Predicated region
  $region6: #{gcn_forward.3} parent=0 // pred_check
    _
  $region7: #{gcn_forward.3} parent=0 // pred_check_branch
    %15 = sbr.rel (0) target = $region9
  $region8: #{gcn_forward.3} parent=0 // pred_region
    _
  $region9: #{gcn_forward.3} parent=0 // pred_fallthru
    _
  // Predicated region
  $region10: #{gcn_forward.3} parent=0 // pred_check
    _
  $region11: #{gcn_forward.3} parent=0 // pred_check_branch
    %17 = sbr.rel (0) target = $region13
  $region12: #{gcn_forward.3} parent=0 // pred_region
    _
  $region13: #{gcn_forward.3} parent=0 // pred_fallthru
    _
  // Predicated region
  $region14: #{gcn_forward.3} parent=0 // pred_check
    _
  $region15: #{gcn_forward.3} parent=0 // pred_check_branch
    %19 = sbr.rel (0) target = $region17
  $region16: #{gcn_forward.3} parent=0 // pred_region
    _
  $region17: #{gcn_forward.3} parent=0 // pred_fallthru
    _
  // Predicated region
  $region18: #{gcn_forward.3} parent=0 // pred_check
    _
  $region19: #{gcn_forward.3} parent=0 // pred_check_branch
    %21 = sbr.rel (0) target = $region21
  $region20: #{gcn_forward.3} parent=0 // pred_region
    _
  $region21: #{gcn_forward.3} parent=0 // pred_fallthru
    _
  // Predicated region
  $region22: #{gcn_forward.3} parent=0 // pred_check
    _
  $region23: #{gcn_forward.3} parent=0 // pred_check_branch
    %23 = sbr.rel (0) target = $region25
  $region24: #{gcn_forward.3} parent=0 // pred_region
    _
  $region25: #{gcn_forward.3} parent=0 // pred_fallthru
    _
  // Predicated region
  $region26: #{gcn_forward.3} parent=0 // pred_check
    _
  $region27: #{gcn_forward.3} parent=0 // pred_check_branch
    %25 = sbr.rel (0) target = $region29
  $region28: #{gcn_forward.3} parent=0 // pred_region
    _
  $region29: #{gcn_forward.3} parent=0 // pred_fallthru
    _
  %p26 = scmp.eq.s32.totalorder 0, 0
  // Predicated region
  $region30: #{gcn_forward.3} parent=0 // pred_check
    %p27 = pneg %p26
  $region31: #{gcn_forward.3} parent=0 // pred_check_branch
    %29 = sbr.rel (%p27) target = $region33
  $region32: #{gcn_forward.3} parent=0 // pred_region
    %30 = vst [vmem:[#allocation2] sm:$0xff] 0.0
    %31 = vst [vmem:[#allocation2 + $0x8] sm:$0xff] 0.0
    %32 = vst [vmem:[#allocation2 + $0x10] sm:$0xff] 0.0
    %33 = vst [vmem:[#allocation2 + $0x18] sm:$0xff] 0.0
    %34 = vst [vmem:[#allocation2 + $0x20] sm:$0xff] 0.0
    %35 = vst [vmem:[#allocation2 + $0x28] sm:$0xff] 0.0
    %36 = vst [vmem:[#allocation2 + $0x30] sm:$0xff] 0.0
    %37 = vst [vmem:[#allocation2 + $0x38] sm:$0xff] 0.0
    %38 = vst [vmem:[#allocation2 + $0x40] sm:$0xff] 0.0
    %39 = vst [vmem:[#allocation2 + $0x48] sm:$0xff] 0.0
    %40 = vst [vmem:[#allocation2 + $0x50] sm:$0xff] 0.0
    %41 = vst [vmem:[#allocation2 + $0x58] sm:$0xff] 0.0
    %42 = vst [vmem:[#allocation2 + $0x60] sm:$0xff] 0.0
    %43 = vst [vmem:[#allocation2 + $0x68] sm:$0xff] 0.0
    %44 = vst [vmem:[#allocation2 + $0x70] sm:$0xff] 0.0
    %45 = vst [vmem:[#allocation2 + $0x78] sm:$0xff] 0.0
  $region33: #{gcn_forward.3} parent=0 // pred_fallthru
    _
  %v46 = vld [vmem:[#allocation2] sm:$0xff]
  %v47 = vld [vmem:[#allocation2 + $0x8] sm:$0xff]
  %v48 = vld [vmem:[#allocation2 + $0x10] sm:$0xff]
  %v49 = vld [vmem:[#allocation2 + $0x18] sm:$0xff]
  %v50 = vld [vmem:[#allocation2 + $0x20] sm:$0xff]
  %v51 = vld [vmem:[#allocation2 + $0x28] sm:$0xff]
  %v52 = vld [vmem:[#allocation2 + $0x30] sm:$0xff]
  %v53 = vld [vmem:[#allocation2 + $0x38] sm:$0xff]
  %v54 = vld [vmem:[#allocation2 + $0x40] sm:$0xff]
  %v55 = vld [vmem:[#allocation2 + $0x48] sm:$0xff]
  %v56 = vld [vmem:[#allocation2 + $0x50] sm:$0xff]
  %v57 = vld [vmem:[#allocation2 + $0x58] sm:$0xff]
  %v58 = vld [vmem:[#allocation2 + $0x60] sm:$0xff]
  %v59 = vld [vmem:[#allocation2 + $0x68] sm:$0xff]
  %v60 = vld [vmem:[#allocation2 + $0x70] sm:$0xff]
  %v61 = vld [vmem:[#allocation2 + $0x78] sm:$0xff]
  %v62 = vld [vmem:[%s0] sm:$0xff]
  %v63 = vld [vmem:[%s0 + $0x8] sm:$0xff]
  %v64 = vld [vmem:[%s0 + $0x10] sm:$0xff]
  %v65 = vld [vmem:[%s0 + $0x18] sm:$0xff]
  %v66 = vunpack.c.0.s8 %v62
  %v67 = vunpack.c.1.s8 %v62
  %v68 = vunpack.c.2.s8 %v62
  %v69 = vunpack.c.3.s8 %v62
  %v70 = vunpack.c.0.s8 %v63
  %v71 = vunpack.c.1.s8 %v63
  %v72 = vunpack.c.2.s8 %v63
  %v73 = vunpack.c.3.s8 %v63
  %v74 = vunpack.c.0.s8 %v64
  %v75 = vunpack.c.1.s8 %v64
  %v76 = vunpack.c.2.s8 %v64
  %v77 = vunpack.c.3.s8 %v64
  %v78 = vunpack.c.0.s8 %v65
  %v79 = vunpack.c.1.s8 %v65
  %v80 = vunpack.c.2.s8 %v65
  %v81 = vunpack.c.3.s8 %v65
  %v82 = vcvt.s32.f32 %v66
  %v83 = vcvt.s32.f32 %v67
  %v84 = vcvt.s32.f32 %v68
  %v85 = vcvt.s32.f32 %v69
  %v86 = vcvt.s32.f32 %v70
  %v87 = vcvt.s32.f32 %v71
  %v88 = vcvt.s32.f32 %v72
  %v89 = vcvt.s32.f32 %v73
  %v90 = vcvt.s32.f32 %v74
  %v91 = vcvt.s32.f32 %v75
  %v92 = vcvt.s32.f32 %v76
  %v93 = vcvt.s32.f32 %v77
  %v94 = vcvt.s32.f32 %v78
  %v95 = vcvt.s32.f32 %v79
  %v96 = vcvt.s32.f32 %v80
  %v97 = vcvt.s32.f32 %v81
  %v98 = vpack.c.bf16 %v83, %v82
  %v99 = vpack.c.bf16 %v85, %v84
  %v100 = vpack.c.bf16 %v87, %v86
  %v101 = vpack.c.bf16 %v89, %v88
  %v102 = vpack.c.bf16 %v91, %v90
  %v103 = vpack.c.bf16 %v93, %v92
  %v104 = vpack.c.bf16 %v95, %v94
  %v105 = vpack.c.bf16 %v97, %v96
  %v106 = vld [vmem:[%s1] sm:$0xf]
  %v107 = vld [vmem:[%s1 + $0x4] sm:$0xf]
  %v108 = vld [vmem:[%s1 + $0x8] sm:$0xf]
  %v109 = vld [vmem:[%s1 + $0xc] sm:$0xf]
  %v110 = vld [vmem:[%s1 + $0x10] sm:$0xf]
  %v111 = vld [vmem:[%s1 + $0x14] sm:$0xf]
  %v112 = vld [vmem:[%s1 + $0x18] sm:$0xf]
  %v113 = vld [vmem:[%s1 + $0x1c] sm:$0xf]
  %v114 = vld [vmem:[%s1 + $0x20] sm:$0xf]
  %v115 = vld [vmem:[%s1 + $0x24] sm:$0xf]
  %v116 = vld [vmem:[%s1 + $0x28] sm:$0xf]
  %v117 = vld [vmem:[%s1 + $0x2c] sm:$0xf]
  %v118 = vld [vmem:[%s1 + $0x30] sm:$0xf]
  %v119 = vld [vmem:[%s1 + $0x34] sm:$0xf]
  %v120 = vld [vmem:[%s1 + $0x38] sm:$0xf]
  %v121 = vld [vmem:[%s1 + $0x3c] sm:$0xf]
  %v138 = vunpack.c.l.b16 %v106
  %v139 = vunpack.c.l.b16 %v107
  %v140 = vunpack.c.l.b16 %v108
  %v141 = vunpack.c.l.b16 %v109
  %v142 = vunpack.c.l.b16 %v110
  %v143 = vunpack.c.l.b16 %v111
  %v144 = vunpack.c.l.b16 %v112
  %v145 = vunpack.c.l.b16 %v113
  %v146 = vunpack.c.l.b16 %v114
  %v147 = vunpack.c.l.b16 %v115
  %v148 = vunpack.c.l.b16 %v116
  %v149 = vunpack.c.l.b16 %v117
  %v150 = vunpack.c.l.b16 %v118
  %v151 = vunpack.c.l.b16 %v119
  %v152 = vunpack.c.l.b16 %v120
  %v153 = vunpack.c.l.b16 %v121
  %v154 = vpack.c.b16 %v139, %v138
  %v155 = vpack.c.b16 %v141, %v140
  %v156 = vpack.c.b16 %v143, %v142
  %v157 = vpack.c.b16 %v145, %v144
  %v158 = vpack.c.b16 %v147, %v146
  %v159 = vpack.c.b16 %v149, %v148
  %v160 = vpack.c.b16 %v151, %v150
  %v161 = vpack.c.b16 %v153, %v152
  %170 = vmatpush.bf16.msra.mxu0 %v161
  %171 = vmatpush.bf16.msra.mxu0 %v160
  %172 = vmatpush.bf16.msra.mxu0 %v159
  %173 = vmatpush.bf16.msra.mxu0 %v158
  %174 = vmatpush.bf16.msra.mxu0 %v157
  %175 = vmatpush.bf16.msra.mxu0 %v156
  %176 = vmatpush.bf16.msra.mxu0 %v155
  %177 = vmatpush.bf16.msra.mxu0 %v154
  %178 = vmatmul.bf16.gmra.mxu0 %v98
  %v179 = vpop.f32.mrf.mxu0
  %v180 = vadd.f32 0.0, %v179
  %v181 = vpop.f32.mrf.mxu0
  %v182 = vadd.f32 0.0, %v181
  %183 = vmatmul.bf16.gmra.mxu0 %v99
  %v184 = vpop.f32.mrf.mxu0
  %v185 = vadd.f32 0.0, %v184
  %v186 = vpop.f32.mrf.mxu0
  %v187 = vadd.f32 0.0, %v186
  %188 = vmatmul.bf16.gmra.mxu0 %v100
  %v189 = vpop.f32.mrf.mxu0
  %v190 = vadd.f32 0.0, %v189
  %v191 = vpop.f32.mrf.mxu0
  %v192 = vadd.f32 0.0, %v191
  %193 = vmatmul.bf16.gmra.mxu0 %v101
  %v194 = vpop.f32.mrf.mxu0
  %v195 = vadd.f32 0.0, %v194
  %v196 = vpop.f32.mrf.mxu0
  %v197 = vadd.f32 0.0, %v196
  %198 = vmatmul.bf16.gmra.mxu0 %v102
  %v199 = vpop.f32.mrf.mxu0
  %v200 = vadd.f32 0.0, %v199
  %v201 = vpop.f32.mrf.mxu0
  %v202 = vadd.f32 0.0, %v201
  %203 = vmatmul.bf16.gmra.mxu0 %v103
  %v204 = vpop.f32.mrf.mxu0
  %v205 = vadd.f32 0.0, %v204
  %v206 = vpop.f32.mrf.mxu0
  %v207 = vadd.f32 0.0, %v206
  %208 = vmatmul.bf16.gmra.mxu0 %v104
  %v209 = vpop.f32.mrf.mxu0
  %v210 = vadd.f32 0.0, %v209
  %v211 = vpop.f32.mrf.mxu0
  %v212 = vadd.f32 0.0, %v211
  %213 = vmatmul.bf16.gmra.mxu0 %v105
  %v214 = vpop.f32.mrf.mxu0
  %v215 = vadd.f32 0.0, %v214
  %v216 = vpop.f32.mrf.mxu0
  %v217 = vadd.f32 0.0, %v216
  %218 = vdwg.mxu0
  %v219 = vadd.f32 %v46, %v180
  %v220 = vadd.f32 %v47, %v182
  %v221 = vadd.f32 %v48, %v185
  %v222 = vadd.f32 %v49, %v187
  %v223 = vadd.f32 %v50, %v190
  %v224 = vadd.f32 %v51, %v192
  %v225 = vadd.f32 %v52, %v195
  %v226 = vadd.f32 %v53, %v197
  %v227 = vadd.f32 %v54, %v200
  %v228 = vadd.f32 %v55, %v202
  %v229 = vadd.f32 %v56, %v205
  %v230 = vadd.f32 %v57, %v207
  %v231 = vadd.f32 %v58, %v210
  %v232 = vadd.f32 %v59, %v212
  %v233 = vadd.f32 %v60, %v215
  %v234 = vadd.f32 %v61, %v217
  %235 = vst [vmem:[#allocation2] sm:$0xff] %v219
  %236 = vst [vmem:[#allocation2 + $0x8] sm:$0xff] %v220
  %237 = vst [vmem:[#allocation2 + $0x10] sm:$0xff] %v221
  %238 = vst [vmem:[#allocation2 + $0x18] sm:$0xff] %v222
  %239 = vst [vmem:[#allocation2 + $0x20] sm:$0xff] %v223
  %240 = vst [vmem:[#allocation2 + $0x28] sm:$0xff] %v224
  %241 = vst [vmem:[#allocation2 + $0x30] sm:$0xff] %v225
  %242 = vst [vmem:[#allocation2 + $0x38] sm:$0xff] %v226
  %243 = vst [vmem:[#allocation2 + $0x40] sm:$0xff] %v227
  %244 = vst [vmem:[#allocation2 + $0x48] sm:$0xff] %v228
  %245 = vst [vmem:[#allocation2 + $0x50] sm:$0xff] %v229
  %246 = vst [vmem:[#allocation2 + $0x58] sm:$0xff] %v230
  %247 = vst [vmem:[#allocation2 + $0x60] sm:$0xff] %v231
  %248 = vst [vmem:[#allocation2 + $0x68] sm:$0xff] %v232
  %249 = vst [vmem:[#allocation2 + $0x70] sm:$0xff] %v233
  %250 = vst [vmem:[#allocation2 + $0x78] sm:$0xff] %v234
  // Predicated region
  $region34: #{gcn_forward.3} parent=0 // pred_check
    %p251 = pneg %p26
  $region35: #{gcn_forward.3} parent=0 // pred_check_branch
    %253 = sbr.rel (%p251) target = $region37
  $region36: #{gcn_forward.3} parent=0 // pred_region
    %v254 = vld [vmem:[#allocation2] sm:$0xff]
    %v255 = vld [vmem:[#allocation2 + $0x8] sm:$0xff]
    %v256 = vld [vmem:[#allocation2 + $0x10] sm:$0xff]
    %v257 = vld [vmem:[#allocation2 + $0x18] sm:$0xff]
    %v258 = vld [vmem:[#allocation2 + $0x20] sm:$0xff]
    %v259 = vld [vmem:[#allocation2 + $0x28] sm:$0xff]
    %v260 = vld [vmem:[#allocation2 + $0x30] sm:$0xff]
    %v261 = vld [vmem:[#allocation2 + $0x38] sm:$0xff]
    %v262 = vld [vmem:[#allocation2 + $0x40] sm:$0xff]
    %v263 = vld [vmem:[#allocation2 + $0x48] sm:$0xff]
    %v264 = vld [vmem:[#allocation2 + $0x50] sm:$0xff]
    %v265 = vld [vmem:[#allocation2 + $0x58] sm:$0xff]
    %v266 = vld [vmem:[#allocation2 + $0x60] sm:$0xff]
    %v267 = vld [vmem:[#allocation2 + $0x68] sm:$0xff]
    %v268 = vld [vmem:[#allocation2 + $0x70] sm:$0xff]
    %v269 = vld [vmem:[#allocation2 + $0x78] sm:$0xff]
    %v270 = vld [vmem:[%s3] sm:$0xff]
    %v271 = vld [vmem:[%s3 + $0x8] sm:$0xff]
    %v272 = vld [vmem:[%s3 + $0x10] sm:$0xff]
    %v273 = vld [vmem:[%s3 + $0x18] sm:$0xff]
    %v274 = vld [vmem:[%s3 + $0x20] sm:$0xff]
    %v275 = vld [vmem:[%s3 + $0x28] sm:$0xff]
    %v276 = vld [vmem:[%s3 + $0x30] sm:$0xff]
    %v277 = vld [vmem:[%s3 + $0x38] sm:$0xff]
    %v278 = vld [vmem:[%s3 + $0x40] sm:$0xff]
    %v279 = vld [vmem:[%s3 + $0x48] sm:$0xff]
    %v280 = vld [vmem:[%s3 + $0x50] sm:$0xff]
    %v281 = vld [vmem:[%s3 + $0x58] sm:$0xff]
    %v282 = vld [vmem:[%s3 + $0x60] sm:$0xff]
    %v283 = vld [vmem:[%s3 + $0x68] sm:$0xff]
    %v284 = vld [vmem:[%s3 + $0x70] sm:$0xff]
    %v285 = vld [vmem:[%s3 + $0x78] sm:$0xff]
    %287 = vset.pattern.permute.xlu0 0
    %288 = vperm.xlu0 %287, %v270
    %v289 = vpop.permute.xlu0 %288
    %292 = vset.pattern.permute.xlu0 0
    %293 = vperm.xlu0 %292, %v271
    %v294 = vpop.permute.xlu0 %293
    %297 = vset.pattern.permute.xlu0 0
    %298 = vperm.xlu0 %297, %v272
    %v299 = vpop.permute.xlu0 %298
    %302 = vset.pattern.permute.xlu0 0
    %303 = vperm.xlu0 %302, %v273
    %v304 = vpop.permute.xlu0 %303
    %307 = vset.pattern.permute.xlu0 0
    %308 = vperm.xlu0 %307, %v274
    %v309 = vpop.permute.xlu0 %308
    %312 = vset.pattern.permute.xlu0 0
    %313 = vperm.xlu0 %312, %v275
    %v314 = vpop.permute.xlu0 %313
    %317 = vset.pattern.permute.xlu0 0
    %318 = vperm.xlu0 %317, %v276
    %v319 = vpop.permute.xlu0 %318
    %322 = vset.pattern.permute.xlu0 0
    %323 = vperm.xlu0 %322, %v277
    %v324 = vpop.permute.xlu0 %323
    %327 = vset.pattern.permute.xlu0 0
    %328 = vperm.xlu0 %327, %v278
    %v329 = vpop.permute.xlu0 %328
    %332 = vset.pattern.permute.xlu0 0
    %333 = vperm.xlu0 %332, %v279
    %v334 = vpop.permute.xlu0 %333
    %337 = vset.pattern.permute.xlu0 0
    %338 = vperm.xlu0 %337, %v280
    %v339 = vpop.permute.xlu0 %338
    %342 = vset.pattern.permute.xlu0 0
    %343 = vperm.xlu0 %342, %v281
    %v344 = vpop.permute.xlu0 %343
    %347 = vset.pattern.permute.xlu0 0
    %348 = vperm.xlu0 %347, %v282
    %v349 = vpop.permute.xlu0 %348
    %352 = vset.pattern.permute.xlu0 0
    %353 = vperm.xlu0 %352, %v283
    %v354 = vpop.permute.xlu0 %353
    %357 = vset.pattern.permute.xlu0 0
    %358 = vperm.xlu0 %357, %v284
    %v359 = vpop.permute.xlu0 %358
    %362 = vset.pattern.permute.xlu0 0
    %363 = vperm.xlu0 %362, %v285
    %v364 = vpop.permute.xlu0 %363
    %v366 = vmul.f32 %v254, %v289
    %v367 = vmul.f32 %v255, %v294
    %v368 = vmul.f32 %v256, %v299
    %v369 = vmul.f32 %v257, %v304
    %v370 = vmul.f32 %v258, %v309
    %v371 = vmul.f32 %v259, %v314
    %v372 = vmul.f32 %v260, %v319
    %v373 = vmul.f32 %v261, %v324
    %v374 = vmul.f32 %v262, %v329
    %v375 = vmul.f32 %v263, %v334
    %v376 = vmul.f32 %v264, %v339
    %v377 = vmul.f32 %v265, %v344
    %v378 = vmul.f32 %v266, %v349
    %v379 = vmul.f32 %v267, %v354
    %v380 = vmul.f32 %v268, %v359
    %v381 = vmul.f32 %v269, %v364
    %v382 = vpack.c.bf16 %v367, %v366
    %v383 = vpack.c.bf16 %v369, %v368
    %v384 = vpack.c.bf16 %v371, %v370
    %v385 = vpack.c.bf16 %v373, %v372
    %v386 = vpack.c.bf16 %v375, %v374
    %v387 = vpack.c.bf16 %v377, %v376
    %v388 = vpack.c.bf16 %v379, %v378
    %v389 = vpack.c.bf16 %v381, %v380
    %v390 = vld [vmem:[%s4] sm:$0xf]
    %v391 = vld [vmem:[%s4 + $0x4] sm:$0xf]
    %v392 = vld [vmem:[%s4 + $0x8] sm:$0xf]
    %v393 = vld [vmem:[%s4 + $0xc] sm:$0xf]
    %v394 = vld [vmem:[%s4 + $0x10] sm:$0xf]
    %v395 = vld [vmem:[%s4 + $0x14] sm:$0xf]
    %v396 = vld [vmem:[%s4 + $0x18] sm:$0xf]
    %v397 = vld [vmem:[%s4 + $0x1c] sm:$0xf]
    %v398 = vld [vmem:[%s4 + $0x20] sm:$0xf]
    %v399 = vld [vmem:[%s4 + $0x24] sm:$0xf]
    %v400 = vld [vmem:[%s4 + $0x28] sm:$0xf]
    %v401 = vld [vmem:[%s4 + $0x2c] sm:$0xf]
    %v402 = vld [vmem:[%s4 + $0x30] sm:$0xf]
    %v403 = vld [vmem:[%s4 + $0x34] sm:$0xf]
    %v404 = vld [vmem:[%s4 + $0x38] sm:$0xf]
    %v405 = vld [vmem:[%s4 + $0x3c] sm:$0xf]
    %v406 = vld [vmem:[%s2] sm:$0xf]
    %v407 = vld [vmem:[%s2 + $0x4] sm:$0xf]
    %v408 = vld [vmem:[%s2 + $0x8] sm:$0xf]
    %v409 = vld [vmem:[%s2 + $0xc] sm:$0xf]
    %v410 = vld [vmem:[%s2 + $0x10] sm:$0xf]
    %v411 = vld [vmem:[%s2 + $0x14] sm:$0xf]
    %v412 = vld [vmem:[%s2 + $0x18] sm:$0xf]
    %v413 = vld [vmem:[%s2 + $0x1c] sm:$0xf]
    %v414 = vld [vmem:[%s2 + $0x20] sm:$0xf]
    %v415 = vld [vmem:[%s2 + $0x24] sm:$0xf]
    %v416 = vld [vmem:[%s2 + $0x28] sm:$0xf]
    %v417 = vld [vmem:[%s2 + $0x2c] sm:$0xf]
    %v418 = vld [vmem:[%s2 + $0x30] sm:$0xf]
    %v419 = vld [vmem:[%s2 + $0x34] sm:$0xf]
    %v420 = vld [vmem:[%s2 + $0x38] sm:$0xf]
    %v421 = vld [vmem:[%s2 + $0x3c] sm:$0xf]
    %v422 = vld [vmem:[%s5] sm:$0xf]
    %v423 = vld [vmem:[%s5 + $0x4] sm:$0xf]
    %v424 = vld [vmem:[%s5 + $0x8] sm:$0xf]
    %v425 = vld [vmem:[%s5 + $0xc] sm:$0xf]
    %v426 = vld [vmem:[%s5 + $0x10] sm:$0xf]
    %v427 = vld [vmem:[%s5 + $0x14] sm:$0xf]
    %v428 = vld [vmem:[%s5 + $0x18] sm:$0xf]
    %v429 = vld [vmem:[%s5 + $0x1c] sm:$0xf]
    %v430 = vld [vmem:[%s5 + $0x20] sm:$0xf]
    %v431 = vld [vmem:[%s5 + $0x24] sm:$0xf]
    %v432 = vld [vmem:[%s5 + $0x28] sm:$0xf]
    %v433 = vld [vmem:[%s5 + $0x2c] sm:$0xf]
    %v434 = vld [vmem:[%s5 + $0x30] sm:$0xf]
    %v435 = vld [vmem:[%s5 + $0x34] sm:$0xf]
    %v436 = vld [vmem:[%s5 + $0x38] sm:$0xf]
    %v437 = vld [vmem:[%s5 + $0x3c] sm:$0xf]
    %v454 = vunpack.c.l.b16 %v406
    %v455 = vunpack.c.l.b16 %v407
    %v456 = vunpack.c.l.b16 %v408
    %v457 = vunpack.c.l.b16 %v409
    %v458 = vunpack.c.l.b16 %v410
    %v459 = vunpack.c.l.b16 %v411
    %v460 = vunpack.c.l.b16 %v412
    %v461 = vunpack.c.l.b16 %v413
    %v462 = vunpack.c.l.b16 %v414
    %v463 = vunpack.c.l.b16 %v415
    %v464 = vunpack.c.l.b16 %v416
    %v465 = vunpack.c.l.b16 %v417
    %v466 = vunpack.c.l.b16 %v418
    %v467 = vunpack.c.l.b16 %v419
    %v468 = vunpack.c.l.b16 %v420
    %v469 = vunpack.c.l.b16 %v421
    %v470 = vpack.c.b16 %v455, %v454
    %v471 = vpack.c.b16 %v457, %v456
    %v472 = vpack.c.b16 %v459, %v458
    %v473 = vpack.c.b16 %v461, %v460
    %v474 = vpack.c.b16 %v463, %v462
    %v475 = vpack.c.b16 %v465, %v464
    %v476 = vpack.c.b16 %v467, %v466
    %v477 = vpack.c.b16 %v469, %v468
    %v502 = vunpack.c.l.b16 %v422
    %v503 = vunpack.c.l.b16 %v423
    %v504 = vunpack.c.l.b16 %v424
    %v505 = vunpack.c.l.b16 %v425
    %v506 = vunpack.c.l.b16 %v426
    %v507 = vunpack.c.l.b16 %v427
    %v508 = vunpack.c.l.b16 %v428
    %v509 = vunpack.c.l.b16 %v429
    %v510 = vunpack.c.l.b16 %v430
    %v511 = vunpack.c.l.b16 %v431
    %v512 = vunpack.c.l.b16 %v432
    %v513 = vunpack.c.l.b16 %v433
    %v514 = vunpack.c.l.b16 %v434
    %v515 = vunpack.c.l.b16 %v435
    %v516 = vunpack.c.l.b16 %v436
    %v517 = vunpack.c.l.b16 %v437
    %v518 = vpack.c.b16 %v503, %v502
    %v519 = vpack.c.b16 %v505, %v504
    %v520 = vpack.c.b16 %v507, %v506
    %v521 = vpack.c.b16 %v509, %v508
    %v522 = vpack.c.b16 %v511, %v510
    %v523 = vpack.c.b16 %v513, %v512
    %v524 = vpack.c.b16 %v515, %v514
    %v525 = vpack.c.b16 %v517, %v516
    %534 = vmatpush.bf16.msra.mxu0 %v525
    %535 = vmatpush.bf16.msra.mxu0 %v524
    %536 = vmatpush.bf16.msra.mxu0 %v523
    %537 = vmatpush.bf16.msra.mxu0 %v522
    %538 = vmatpush.bf16.msra.mxu0 %v521
    %539 = vmatpush.bf16.msra.mxu0 %v520
    %540 = vmatpush.bf16.msra.mxu0 %v519
    %541 = vmatpush.bf16.msra.mxu0 %v518
    %542 = vmatmul.bf16.gmra.mxu0 %v470
    %v543 = vpop.f32.mrf.mxu0
    %v544 = vadd.f32 0.0, %v543
    %v545 = vpop.f32.mrf.mxu0
    %v546 = vadd.f32 0.0, %v545
    %547 = vmatmul.bf16.gmra.mxu0 %v471
    %v548 = vpop.f32.mrf.mxu0
    %v549 = vadd.f32 0.0, %v548
    %v550 = vpop.f32.mrf.mxu0
    %v551 = vadd.f32 0.0, %v550
    %552 = vmatmul.bf16.gmra.mxu0 %v472
    %v553 = vpop.f32.mrf.mxu0
    %v554 = vadd.f32 0.0, %v553
    %v555 = vpop.f32.mrf.mxu0
    %v556 = vadd.f32 0.0, %v555
    %557 = vmatmul.bf16.gmra.mxu0 %v473
    %v558 = vpop.f32.mrf.mxu0
    %v559 = vadd.f32 0.0, %v558
    %v560 = vpop.f32.mrf.mxu0
    %v561 = vadd.f32 0.0, %v560
    %562 = vmatmul.bf16.gmra.mxu0 %v474
    %v563 = vpop.f32.mrf.mxu0
    %v564 = vadd.f32 0.0, %v563
    %v565 = vpop.f32.mrf.mxu0
    %v566 = vadd.f32 0.0, %v565
    %567 = vmatmul.bf16.gmra.mxu0 %v475
    %v568 = vpop.f32.mrf.mxu0
    %v569 = vadd.f32 0.0, %v568
    %v570 = vpop.f32.mrf.mxu0
    %v571 = vadd.f32 0.0, %v570
    %572 = vmatmul.bf16.gmra.mxu0 %v476
    %v573 = vpop.f32.mrf.mxu0
    %v574 = vadd.f32 0.0, %v573
    %v575 = vpop.f32.mrf.mxu0
    %v576 = vadd.f32 0.0, %v575
    %577 = vmatmul.bf16.gmra.mxu0 %v477
    %v578 = vpop.f32.mrf.mxu0
    %v579 = vadd.f32 0.0, %v578
    %v580 = vpop.f32.mrf.mxu0
    %v581 = vadd.f32 0.0, %v580
    %582 = vdwg.mxu0
    %v599 = vunpack.c.l.b16 %v390
    %v600 = vunpack.c.l.b16 %v391
    %v601 = vunpack.c.l.b16 %v392
    %v602 = vunpack.c.l.b16 %v393
    %v603 = vunpack.c.l.b16 %v394
    %v604 = vunpack.c.l.b16 %v395
    %v605 = vunpack.c.l.b16 %v396
    %v606 = vunpack.c.l.b16 %v397
    %v607 = vunpack.c.l.b16 %v398
    %v608 = vunpack.c.l.b16 %v399
    %v609 = vunpack.c.l.b16 %v400
    %v610 = vunpack.c.l.b16 %v401
    %v611 = vunpack.c.l.b16 %v402
    %v612 = vunpack.c.l.b16 %v403
    %v613 = vunpack.c.l.b16 %v404
    %v614 = vunpack.c.l.b16 %v405
    %v615 = vpack.c.b16 %v600, %v599
    %v616 = vpack.c.b16 %v602, %v601
    %v617 = vpack.c.b16 %v604, %v603
    %v618 = vpack.c.b16 %v606, %v605
    %v619 = vpack.c.b16 %v608, %v607
    %v620 = vpack.c.b16 %v610, %v609
    %v621 = vpack.c.b16 %v612, %v611
    %v622 = vpack.c.b16 %v614, %v613
    %631 = vmatpush.bf16.msra.mxu0 %v622
    %632 = vmatpush.bf16.msra.mxu0 %v621
    %633 = vmatpush.bf16.msra.mxu0 %v620
    %634 = vmatpush.bf16.msra.mxu0 %v619
    %635 = vmatpush.bf16.msra.mxu0 %v618
    %636 = vmatpush.bf16.msra.mxu0 %v617
    %637 = vmatpush.bf16.msra.mxu0 %v616
    %638 = vmatpush.bf16.msra.mxu0 %v615
    %639 = vmatmul.bf16.gmra.mxu0 %v382
    %v640 = vpop.f32.mrf.mxu0
    %v641 = vadd.f32 %v544, %v640
    %v642 = vpop.f32.mrf.mxu0
    %v643 = vadd.f32 %v546, %v642
    %644 = vmatmul.bf16.gmra.mxu0 %v383
    %v645 = vpop.f32.mrf.mxu0
    %v646 = vadd.f32 %v549, %v645
    %v647 = vpop.f32.mrf.mxu0
    %v648 = vadd.f32 %v551, %v647
    %649 = vmatmul.bf16.gmra.mxu0 %v384
    %v650 = vpop.f32.mrf.mxu0
    %v651 = vadd.f32 %v554, %v650
    %v652 = vpop.f32.mrf.mxu0
    %v653 = vadd.f32 %v556, %v652
    %654 = vmatmul.bf16.gmra.mxu0 %v385
    %v655 = vpop.f32.mrf.mxu0
    %v656 = vadd.f32 %v559, %v655
    %v657 = vpop.f32.mrf.mxu0
    %v658 = vadd.f32 %v561, %v657
    %659 = vmatmul.bf16.gmra.mxu0 %v386
    %v660 = vpop.f32.mrf.mxu0
    %v661 = vadd.f32 %v564, %v660
    %v662 = vpop.f32.mrf.mxu0
    %v663 = vadd.f32 %v566, %v662
    %664 = vmatmul.bf16.gmra.mxu0 %v387
    %v665 = vpop.f32.mrf.mxu0
    %v666 = vadd.f32 %v569, %v665
    %v667 = vpop.f32.mrf.mxu0
    %v668 = vadd.f32 %v571, %v667
    %669 = vmatmul.bf16.gmra.mxu0 %v388
    %v670 = vpop.f32.mrf.mxu0
    %v671 = vadd.f32 %v574, %v670
    %v672 = vpop.f32.mrf.mxu0
    %v673 = vadd.f32 %v576, %v672
    %674 = vmatmul.bf16.gmra.mxu0 %v389
    %v675 = vpop.f32.mrf.mxu0
    %v676 = vadd.f32 %v579, %v675
    %v677 = vpop.f32.mrf.mxu0
    %v678 = vadd.f32 %v581, %v677
    %679 = vdwg.mxu0
    %v680 = vld [vmem:[%s6] sm:$0x1]
    %v682 = vperm.slane %v680, 0
    %v684 = vadd.f32 %v641, %v682
    %v685 = vadd.f32 %v643, %v682
    %v686 = vadd.f32 %v646, %v682
    %v687 = vadd.f32 %v648, %v682
    %v688 = vadd.f32 %v651, %v682
    %v689 = vadd.f32 %v653, %v682
    %v690 = vadd.f32 %v656, %v682
    %v691 = vadd.f32 %v658, %v682
    %v692 = vadd.f32 %v661, %v682
    %v693 = vadd.f32 %v663, %v682
    %v694 = vadd.f32 %v666, %v682
    %v695 = vadd.f32 %v668, %v682
    %v696 = vadd.f32 %v671, %v682
    %v697 = vadd.f32 %v673, %v682
    %v698 = vadd.f32 %v676, %v682
    %v699 = vadd.f32 %v678, %v682
    %v700 = vmax.f32 %v684, 0.0
    %v701 = vmax.f32 %v685, 0.0
    %v702 = vmax.f32 %v686, 0.0
    %v703 = vmax.f32 %v687, 0.0
    %v704 = vmax.f32 %v688, 0.0
    %v705 = vmax.f32 %v689, 0.0
    %v706 = vmax.f32 %v690, 0.0
    %v707 = vmax.f32 %v691, 0.0
    %v708 = vmax.f32 %v692, 0.0
    %v709 = vmax.f32 %v693, 0.0
    %v710 = vmax.f32 %v694, 0.0
    %v711 = vmax.f32 %v695, 0.0
    %v712 = vmax.f32 %v696, 0.0
    %v713 = vmax.f32 %v697, 0.0
    %v714 = vmax.f32 %v698, 0.0
    %v715 = vmax.f32 %v699, 0.0
    %v716 = vpack.c.bf16 %v700, %v700
    %v717 = vpack.c.bf16 %v701, %v701
    %v718 = vpack.c.bf16 %v702, %v702
    %v719 = vpack.c.bf16 %v703, %v703
    %v720 = vpack.c.bf16 %v704, %v704
    %v721 = vpack.c.bf16 %v705, %v705
    %v722 = vpack.c.bf16 %v706, %v706
    %v723 = vpack.c.bf16 %v707, %v707
    %v724 = vpack.c.bf16 %v708, %v708
    %v725 = vpack.c.bf16 %v709, %v709
    %v726 = vpack.c.bf16 %v710, %v710
    %v727 = vpack.c.bf16 %v711, %v711
    %v728 = vpack.c.bf16 %v712, %v712
    %v729 = vpack.c.bf16 %v713, %v713
    %v730 = vpack.c.bf16 %v714, %v714
    %v731 = vpack.c.bf16 %v715, %v715
    %732 = vst [vmem:[%s7] sm:$0xf] %v716
    %733 = vst [vmem:[%s7 + $0x4] sm:$0xf] %v717
    %734 = vst [vmem:[%s7 + $0x8] sm:$0xf] %v718
    %735 = vst [vmem:[%s7 + $0xc] sm:$0xf] %v719
    %736 = vst [vmem:[%s7 + $0x10] sm:$0xf] %v720
    %737 = vst [vmem:[%s7 + $0x14] sm:$0xf] %v721
    %738 = vst [vmem:[%s7 + $0x18] sm:$0xf] %v722
    %739 = vst [vmem:[%s7 + $0x1c] sm:$0xf] %v723
    %740 = vst [vmem:[%s7 + $0x20] sm:$0xf] %v724
    %741 = vst [vmem:[%s7 + $0x24] sm:$0xf] %v725
    %742 = vst [vmem:[%s7 + $0x28] sm:$0xf] %v726
    %743 = vst [vmem:[%s7 + $0x2c] sm:$0xf] %v727
    %744 = vst [vmem:[%s7 + $0x30] sm:$0xf] %v728
    %745 = vst [vmem:[%s7 + $0x34] sm:$0xf] %v729
    %746 = vst [vmem:[%s7 + $0x38] sm:$0xf] %v730
    %747 = vst [vmem:[%s7 + $0x3c] sm:$0xf] %v731
  $region37: #{gcn_forward.3} parent=0 // pred_fallthru
    _
  // Predicated region
  $region38: #{gcn_forward.3} parent=0 // pred_check
    _
  $region39: #{gcn_forward.3} parent=0 // pred_check_branch
    %749 = sbr.rel (0) target = $region41
  $region40: #{gcn_forward.3} parent=0 // pred_region
    _
  $region41: #{gcn_forward.3} parent=0 // pred_fallthru
    _
  // Predicated region
  $region42: #{gcn_forward.3} parent=0 // pred_check
    _
  $region43: #{gcn_forward.3} parent=0 // pred_check_branch
    %751 = sbr.rel (0) target = $region45
  $region44: #{gcn_forward.3} parent=0 // pred_region
    _
  $region45: #{gcn_forward.3} parent=0 // pred_fallthru
    _

</llo_original>
